<compile_context>
chip_gen: v5e
topology: v5e:2x2
jax: 0.10.0
libtpu: 0.0.40
codegen_flags: <defaults>
</compile_context>

<pallas_src>
import jax
import jax.numpy as jnp
from jax.experimental import pallas as pl
from jax.experimental.pallas import tpu as pltpu


def cnn_heart_kernel(x_ref, w1_ref, b1_ref, w1c_ref, b1c_ref,
                     w2c_ref, b2c_ref, w3c_ref, b3c_ref,
                     selE1_ref, selO1_ref, selE2_ref, selO2_ref,
                     expE_ref, maskD_ref, gsel_ref,
                     w2f_ref, b2_ref, w3f_ref, b3_ref,
                     out_ref):
    N = x_ref.shape[0]
    relu = lambda v: jnp.maximum(v, 0.0)
    dot = lambda a, b: jnp.dot(a, b, preferred_element_type=jnp.float32)

    # Hoist all weights / constants out of the unrolled batch loop.
    w1c, b1c = w1c_ref[...], b1c_ref[...]
    w2c, b2c = w2c_ref[...], b2c_ref[...]
    w3c, b3c = w3c_ref[...], b3c_ref[...]
    selE1, selO1 = selE1_ref[...], selO1_ref[...]
    selE2, selO2 = selE2_ref[...], selO2_ref[...]
    expE, maskD = expE_ref[...], maskD_ref[...]

    # fc1 for the whole batch: (N, seq_len) @ (seq_len, 128) -> (N, 128)
    h_all = relu(dot(x_ref[...], w1_ref[...]) + b1_ref[...])

    rows = []
    for n in range(N):                          # static unroll; N is tiny
        h = h_all[n:n + 1, :]                   # (1, 128) == conv1 input (Cin=1, L=128)

        # conv1 (1->16, K=3): 3 broadcast multiplies (K=3 too small for the MXU)
        a1 = relu(w1c[:, 0:1] * h[:, 0:126]
                  + w1c[:, 1:2] * h[:, 1:127]
                  + w1c[:, 2:3] * h[:, 2:128] + b1c)            # (16, 126)

        # conv2 (16->16, K=3): im2col (48, 124), one MXU matmul
        pt = jnp.concatenate([a1[:, 0:124], a1[:, 1:125], a1[:, 2:126]], axis=0)
        a2 = relu(dot(w2c, pt) + b2c)                           # (16, 124)

        # maxpool1 (2, stride 2) via even/odd selection matmuls   (16, 62)
        q1 = jnp.maximum(dot(a2, selE1), dot(a2, selO1))

        # conv3 (16->16, K=3): im2col (48, 60), one MXU matmul
        pt = jnp.concatenate([q1[:, 0:60], q1[:, 1:61], q1[:, 2:62]], axis=0)
        a3 = relu(dot(w3c, pt) + b3c)                           # (16, 60)

        # maxpool2 (2, stride 2)                                  (16, 30)
        q2 = jnp.maximum(dot(a3, selE2), dot(a3, selO2))
        rows.append(q2)

    # Flatten to PyTorch's x.view(-1, 480) order (flat index = c*30 + t)
    # without any in-kernel reshape: expand each channel row to its 30-lane
    # block with constant selection matrices, then sum channel groups.
    q_all = jnp.concatenate(rows, axis=0)                       # (N*16, 30)
    m_all = dot(q_all, expE) * maskD                            # (N*16, 480)
    flat = dot(gsel_ref[...], m_all)                            # (N, 480)

    h2 = relu(dot(flat, w2f_ref[...]) + b2_ref[...])            # (N, 64)
    out_ref[...] = dot(h2, w3f_ref[...]) + b3_ref[...]          # single store


@jax.jit
def cnn_heart_forward(x, params):
    """x: (N, 1, seq_len) float32, PyTorch NCL convention."""
    N, _, seq_len = x.shape
    n_classes = params['fc3_w'].shape[0]
    f32 = jnp.float32

    # --- glue: rearrange inputs/weights into kernel layout (plain JAX) ---
    x2d = x[:, 0, :].astype(f32)                                  # (N, seq_len)
    w1 = jnp.transpose(params['fc1_w'], (1, 0))                   # (seq_len, 128)
    b1 = params['fc1_b'].reshape(1, 128)
    w1c = params['conv1_w'][:, 0, :]                              # (16, 3)
    b1c = params['conv1_b'].reshape(16, 1)
    # conv weights as (co, k*16 + ci) matching the im2col row order
    w2c = jnp.transpose(params['conv2_w'], (0, 2, 1)).reshape(16, 48)
    b2c = params['conv2_b'].reshape(16, 1)
    w3c = jnp.transpose(params['conv3_w'], (0, 2, 1)).reshape(16, 48)
    b3c = params['conv3_b'].reshape(16, 1)

    # constant 0/1 selection matrices (exact in f32)
    def pool_sel(l_in):
        jj = jnp.arange(l_in)[:, None]
        tt = jnp.arange(l_in // 2)[None, :]
        return ((jj == 2 * tt).astype(f32), (jj == 2 * tt + 1).astype(f32))
    selE1, selO1 = pool_sel(124)                                  # (124, 62) x2
    selE2, selO2 = pool_sel(60)                                   # (60, 30)  x2

    j = jnp.arange(480)
    expE = (jnp.arange(30)[:, None] == (j[None, :] % 30)).astype(f32)          # (30, 480)
    maskD = ((jnp.arange(N * 16)[:, None] % 16) == (j[None, :] // 30)).astype(f32)  # (N*16, 480)
    gsel = (jnp.arange(N)[:, None] == (jnp.arange(N * 16)[None, :] // 16)).astype(f32)  # (N, N*16)

    w2f = jnp.transpose(params['fc2_w'], (1, 0))                  # (480, 64)
    b2 = params['fc2_b'].reshape(1, 64)
    w3f = jnp.transpose(params['fc3_w'], (1, 0))                  # (64, n_classes)
    b3 = params['fc3_b'].reshape(1, n_classes)

    ins = (x2d, w1, b1, w1c, b1c, w2c, b2c, w3c, b3c,
           selE1, selO1, selE2, selO2, expE, maskD, gsel, w2f, b2, w3f, b3)
    vmem_specs = [pl.BlockSpec(memory_space=pltpu.MemorySpace.VMEM) for _ in ins]

    return pl.pallas_call(
        cnn_heart_kernel,
        out_shape=jax.ShapeDtypeStruct((N, n_classes), jnp.float32),
        in_specs=vmem_specs,
        out_specs=pl.BlockSpec(memory_space=pltpu.MemorySpace.VMEM),
    )(*ins)


def ref_forward(x, params):
    """Pure-JAX reference matching the PyTorch module exactly (NCL layout)."""
    relu = lambda v: jnp.maximum(v, 0.0)

    def conv1d(inp, w, b):
        K = w.shape[2]
        Lout = inp.shape[2] - K + 1
        patches = jnp.stack([inp[:, :, k:k + Lout] for k in range(K)], axis=-1)
        return jnp.einsum('nclk,ock->nol', patches, w) + b[None, :, None]

    def pool(inp):
        Nb, C, L = inp.shape
        return inp.reshape(Nb, C, L // 2, 2).max(axis=-1)

    h = relu(jnp.einsum('ncs,os->nco', x, params['fc1_w']) + params['fc1_b'])
    a = relu(conv1d(h, params['conv1_w'], params['conv1_b']))
    a = pool(relu(conv1d(a, params['conv2_w'], params['conv2_b'])))
    a = pool(relu(conv1d(a, params['conv3_w'], params['conv3_b'])))
    flat = a.reshape(a.shape[0], -1)                              # (N, 480)
    h2 = relu(flat @ params['fc2_w'].T + params['fc2_b'])
    return h2 @ params['fc3_w'].T + params['fc3_b']


if __name__ == "__main__":
    seq_len, n_classes, N = 16, 5, 2
    key = jax.random.PRNGKey(0)
    keys = jax.random.split(key, 16)

    def init(k, shape, scale=0.1):
        return (scale * jax.random.normal(k, shape)).astype(jnp.float32)

    params = {
        'fc1_w':  init(keys[0], (128, seq_len)),
        'fc1_b':  init(keys[1], (128,)),
        'conv1_w': init(keys[2], (16, 1, 3)),
        'conv1_b': init(keys[3], (16,)),
        'conv2_w': init(keys[4], (16, 16, 3)),
        'conv2_b': init(keys[5], (16,)),
        'conv3_w': init(keys[6], (16, 16, 3)),
        'conv3_b': init(keys[7], (16,)),
        'fc2_w':  init(keys[8], (64, 480)),
        'fc2_b':  init(keys[9], (64,)),
        'fc3_w':  init(keys[10], (n_classes, 64)),
        'fc3_b':  init(keys[11], (n_classes,)),
    }
    x = init(keys[12], (N, 1, seq_len), scale=1.0)

    out = jax.block_until_ready(cnn_heart_forward(x, params))
    ref = ref_forward(x, params)

    assert out.shape == (N, n_classes)
    assert jnp.allclose(out, ref, atol=1e-3, rtol=1e-2), (out, ref)
    print("KERNEL_OK")
</pallas_src>

<mosaic_0001>
module attributes {stable_mosaic.version = 11 : i64} {
  func.func @cnn_heart_kernel(%arg0: memref<2x16xf32, #tpu.memory_space<vmem>>, %arg1: memref<16x128xf32, #tpu.memory_space<vmem>>, %arg2: memref<1x128xf32, #tpu.memory_space<vmem>>, %arg3: memref<16x3xf32, #tpu.memory_space<vmem>>, %arg4: memref<16x1xf32, #tpu.memory_space<vmem>>, %arg5: memref<16x48xf32, #tpu.memory_space<vmem>>, %arg6: memref<16x1xf32, #tpu.memory_space<vmem>>, %arg7: memref<16x48xf32, #tpu.memory_space<vmem>>, %arg8: memref<16x1xf32, #tpu.memory_space<vmem>>, %arg9: memref<124x62xf32, #tpu.memory_space<vmem>>, %arg10: memref<124x62xf32, #tpu.memory_space<vmem>>, %arg11: memref<60x30xf32, #tpu.memory_space<vmem>>, %arg12: memref<60x30xf32, #tpu.memory_space<vmem>>, %arg13: memref<30x480xf32, #tpu.memory_space<vmem>>, %arg14: memref<32x480xf32, #tpu.memory_space<vmem>>, %arg15: memref<2x32xf32, #tpu.memory_space<vmem>>, %arg16: memref<480x64xf32, #tpu.memory_space<vmem>>, %arg17: memref<1x64xf32, #tpu.memory_space<vmem>>, %arg18: memref<64x5xf32, #tpu.memory_space<vmem>>, %arg19: memref<1x5xf32, #tpu.memory_space<vmem>>, %arg20: memref<2x5xf32, #tpu.memory_space<vmem>>) attributes {dimension_semantics = [], scalar_prefetch = 0 : i64, scratch_operands = 0 : i64, tpu.core_type = #tpu.core_type<tc>} {
    %c0 = arith.constant 0 : index
    %c0_0 = arith.constant 0 : index
    %0 = vector.load %arg3[%c0, %c0_0] : memref<16x3xf32, #tpu.memory_space<vmem>>, vector<16x3xf32>
    %c0_1 = arith.constant 0 : index
    %c0_2 = arith.constant 0 : index
    %1 = vector.load %arg4[%c0_1, %c0_2] : memref<16x1xf32, #tpu.memory_space<vmem>>, vector<16x1xf32>
    %c0_3 = arith.constant 0 : index
    %c0_4 = arith.constant 0 : index
    %2 = vector.load %arg5[%c0_3, %c0_4] : memref<16x48xf32, #tpu.memory_space<vmem>>, vector<16x48xf32>
    %c0_5 = arith.constant 0 : index
    %c0_6 = arith.constant 0 : index
    %3 = vector.load %arg6[%c0_5, %c0_6] : memref<16x1xf32, #tpu.memory_space<vmem>>, vector<16x1xf32>
    %c0_7 = arith.constant 0 : index
    %c0_8 = arith.constant 0 : index
    %4 = vector.load %arg7[%c0_7, %c0_8] : memref<16x48xf32, #tpu.memory_space<vmem>>, vector<16x48xf32>
    %c0_9 = arith.constant 0 : index
    %c0_10 = arith.constant 0 : index
    %5 = vector.load %arg8[%c0_9, %c0_10] : memref<16x1xf32, #tpu.memory_space<vmem>>, vector<16x1xf32>
    %c0_11 = arith.constant 0 : index
    %c0_12 = arith.constant 0 : index
    %6 = vector.load %arg9[%c0_11, %c0_12] : memref<124x62xf32, #tpu.memory_space<vmem>>, vector<124x62xf32>
    %c0_13 = arith.constant 0 : index
    %c0_14 = arith.constant 0 : index
    %7 = vector.load %arg10[%c0_13, %c0_14] : memref<124x62xf32, #tpu.memory_space<vmem>>, vector<124x62xf32>
    %c0_15 = arith.constant 0 : index
    %c0_16 = arith.constant 0 : index
    %8 = vector.load %arg11[%c0_15, %c0_16] : memref<60x30xf32, #tpu.memory_space<vmem>>, vector<60x30xf32>
    %c0_17 = arith.constant 0 : index
    %c0_18 = arith.constant 0 : index
    %9 = vector.load %arg12[%c0_17, %c0_18] : memref<60x30xf32, #tpu.memory_space<vmem>>, vector<60x30xf32>
    %c0_19 = arith.constant 0 : index
    %c0_20 = arith.constant 0 : index
    %10 = vector.load %arg13[%c0_19, %c0_20] : memref<30x480xf32, #tpu.memory_space<vmem>>, vector<30x480xf32>
    %c0_21 = arith.constant 0 : index
    %c0_22 = arith.constant 0 : index
    %11 = vector.load %arg14[%c0_21, %c0_22] : memref<32x480xf32, #tpu.memory_space<vmem>>, vector<32x480xf32>
    %c0_23 = arith.constant 0 : index
    %c0_24 = arith.constant 0 : index
    %12 = vector.load %arg0[%c0_23, %c0_24] : memref<2x16xf32, #tpu.memory_space<vmem>>, vector<2x16xf32>
    %c0_25 = arith.constant 0 : index
    %c0_26 = arith.constant 0 : index
    %13 = vector.load %arg1[%c0_25, %c0_26] : memref<16x128xf32, #tpu.memory_space<vmem>>, vector<16x128xf32>
    %cst = arith.constant dense<0.000000e+00> : vector<2x128xf32>
    %14 = tpu.matmul %12, %13, %cst {dimension_numbers = #tpu.dot_dimension_numbers<[1], [0], [0], [1], [0, 0, 1, 1], [], []>} : vector<2x16xf32>, vector<16x128xf32>, vector<2x128xf32> -> vector<2x128xf32>
    %c0_27 = arith.constant 0 : index
    %c0_28 = arith.constant 0 : index
    %15 = vector.load %arg2[%c0_27, %c0_28] : memref<1x128xf32, #tpu.memory_space<vmem>>, vector<1x128xf32>
    %16 = vector.broadcast %15 : vector<1x128xf32> to vector<2x128xf32>
    %17 = arith.addf %14, %16 : vector<2x128xf32>
    %cst_29 = arith.constant 0.000000e+00 : f32
    %18 = vector.broadcast %cst_29 : f32 to vector<2x128xf32>
    %19 = arith.maximumf %17, %18 : vector<2x128xf32>
    %20 = vector.extract_strided_slice %19 {offsets = [0, 0], sizes = [1, 128], strides = [1, 1]} : vector<2x128xf32> to vector<1x128xf32>
    %21 = vector.extract_strided_slice %0 {offsets = [0, 0], sizes = [16, 1], strides = [1, 1]} : vector<16x3xf32> to vector<16x1xf32>
    %22 = vector.extract_strided_slice %20 {offsets = [0, 0], sizes = [1, 126], strides = [1, 1]} : vector<1x128xf32> to vector<1x126xf32>
    %23 = vector.broadcast %21 : vector<16x1xf32> to vector<16x126xf32>
    %24 = vector.broadcast %22 : vector<1x126xf32> to vector<16x126xf32>
    %25 = arith.mulf %23, %24 : vector<16x126xf32>
    %26 = vector.extract_strided_slice %0 {offsets = [0, 1], sizes = [16, 1], strides = [1, 1]} : vector<16x3xf32> to vector<16x1xf32>
    %27 = vector.extract_strided_slice %20 {offsets = [0, 1], sizes = [1, 126], strides = [1, 1]} : vector<1x128xf32> to vector<1x126xf32>
    %28 = vector.broadcast %26 : vector<16x1xf32> to vector<16x126xf32>
    %29 = vector.broadcast %27 : vector<1x126xf32> to vector<16x126xf32>
    %30 = arith.mulf %28, %29 : vector<16x126xf32>
    %31 = arith.addf %25, %30 : vector<16x126xf32>
    %32 = vector.extract_strided_slice %0 {offsets = [0, 2], sizes = [16, 1], strides = [1, 1]} : vector<16x3xf32> to vector<16x1xf32>
    %33 = vector.extract_strided_slice %20 {offsets = [0, 2], sizes = [1, 126], strides = [1, 1]} : vector<1x128xf32> to vector<1x126xf32>
    %34 = vector.broadcast %32 : vector<16x1xf32> to vector<16x126xf32>
    %35 = vector.broadcast %33 : vector<1x126xf32> to vector<16x126xf32>
    %36 = arith.mulf %34, %35 : vector<16x126xf32>
    %37 = arith.addf %31, %36 : vector<16x126xf32>
    %38 = vector.broadcast %1 : vector<16x1xf32> to vector<16x126xf32>
    %39 = arith.addf %37, %38 : vector<16x126xf32>
    %cst_30 = arith.constant 0.000000e+00 : f32
    %40 = vector.broadcast %cst_30 : f32 to vector<16x126xf32>
    %41 = arith.maximumf %39, %40 : vector<16x126xf32>
    %42 = vector.extract_strided_slice %41 {offsets = [0, 0], sizes = [16, 124], strides = [1, 1]} : vector<16x126xf32> to vector<16x124xf32>
    %43 = vector.extract_strided_slice %41 {offsets = [0, 1], sizes = [16, 124], strides = [1, 1]} : vector<16x126xf32> to vector<16x124xf32>
    %44 = vector.extract_strided_slice %41 {offsets = [0, 2], sizes = [16, 124], strides = [1, 1]} : vector<16x126xf32> to vector<16x124xf32>
    %45 = tpu.concatenate %42, %43, %44 in 0 : vector<16x124xf32>, vector<16x124xf32>, vector<16x124xf32> -> vector<48x124xf32>
    %cst_31 = arith.constant dense<0.000000e+00> : vector<16x124xf32>
    %46 = tpu.matmul %2, %45, %cst_31 {dimension_numbers = #tpu.dot_dimension_numbers<[1], [0], [0], [1], [0, 0, 1, 1], [], []>} : vector<16x48xf32>, vector<48x124xf32>, vector<16x124xf32> -> vector<16x124xf32>
    %47 = vector.broadcast %3 : vector<16x1xf32> to vector<16x124xf32>
    %48 = arith.addf %46, %47 : vector<16x124xf32>
    %cst_32 = arith.constant 0.000000e+00 : f32
    %49 = vector.broadcast %cst_32 : f32 to vector<16x124xf32>
    %50 = arith.maximumf %48, %49 : vector<16x124xf32>
    %cst_33 = arith.constant dense<0.000000e+00> : vector<16x62xf32>
    %51 = tpu.matmul %50, %6, %cst_33 {dimension_numbers = #tpu.dot_dimension_numbers<[1], [0], [0], [1], [0, 0, 1, 1], [], []>} : vector<16x124xf32>, vector<124x62xf32>, vector<16x62xf32> -> vector<16x62xf32>
    %cst_34 = arith.constant dense<0.000000e+00> : vector<16x62xf32>
    %52 = tpu.matmul %50, %7, %cst_34 {dimension_numbers = #tpu.dot_dimension_numbers<[1], [0], [0], [1], [0, 0, 1, 1], [], []>} : vector<16x124xf32>, vector<124x62xf32>, vector<16x62xf32> -> vector<16x62xf32>
    %53 = arith.maximumf %51, %52 : vector<16x62xf32>
    %54 = vector.extract_strided_slice %53 {offsets = [0, 0], sizes = [16, 60], strides = [1, 1]} : vector<16x62xf32> to vector<16x60xf32>
    %55 = vector.extract_strided_slice %53 {offsets = [0, 1], sizes = [16, 60], strides = [1, 1]} : vector<16x62xf32> to vector<16x60xf32>
    %56 = vector.extract_strided_slice %53 {offsets = [0, 2], sizes = [16, 60], strides = [1, 1]} : vector<16x62xf32> to vector<16x60xf32>
    %57 = tpu.concatenate %54, %55, %56 in 0 : vector<16x60xf32>, vector<16x60xf32>, vector<16x60xf32> -> vector<48x60xf32>
    %cst_35 = arith.constant dense<0.000000e+00> : vector<16x60xf32>
    %58 = tpu.matmul %4, %57, %cst_35 {dimension_numbers = #tpu.dot_dimension_numbers<[1], [0], [0], [1], [0, 0, 1, 1], [], []>} : vector<16x48xf32>, vector<48x60xf32>, vector<16x60xf32> -> vector<16x60xf32>
    %59 = vector.broadcast %5 : vector<16x1xf32> to vector<16x60xf32>
    %60 = arith.addf %58, %59 : vector<16x60xf32>
    %cst_36 = arith.constant 0.000000e+00 : f32
    %61 = vector.broadcast %cst_36 : f32 to vector<16x60xf32>
    %62 = arith.maximumf %60, %61 : vector<16x60xf32>
    %cst_37 = arith.constant dense<0.000000e+00> : vector<16x30xf32>
    %63 = tpu.matmul %62, %8, %cst_37 {dimension_numbers = #tpu.dot_dimension_numbers<[1], [0], [0], [1], [0, 0, 1, 1], [], []>} : vector<16x60xf32>, vector<60x30xf32>, vector<16x30xf32> -> vector<16x30xf32>
    %cst_38 = arith.constant dense<0.000000e+00> : vector<16x30xf32>
    %64 = tpu.matmul %62, %9, %cst_38 {dimension_numbers = #tpu.dot_dimension_numbers<[1], [0], [0], [1], [0, 0, 1, 1], [], []>} : vector<16x60xf32>, vector<60x30xf32>, vector<16x30xf32> -> vector<16x30xf32>
    %65 = arith.maximumf %63, %64 : vector<16x30xf32>
    %66 = vector.extract_strided_slice %19 {offsets = [1, 0], sizes = [1, 128], strides = [1, 1]} : vector<2x128xf32> to vector<1x128xf32>
    %67 = vector.extract_strided_slice %0 {offsets = [0, 0], sizes = [16, 1], strides = [1, 1]} : vector<16x3xf32> to vector<16x1xf32>
    %68 = vector.extract_strided_slice %66 {offsets = [0, 0], sizes = [1, 126], strides = [1, 1]} : vector<1x128xf32> to vector<1x126xf32>
    %69 = vector.broadcast %67 : vector<16x1xf32> to vector<16x126xf32>
    %70 = vector.broadcast %68 : vector<1x126xf32> to vector<16x126xf32>
    %71 = arith.mulf %69, %70 : vector<16x126xf32>
    %72 = vector.extract_strided_slice %0 {offsets = [0, 1], sizes = [16, 1], strides = [1, 1]} : vector<16x3xf32> to vector<16x1xf32>
    %73 = vector.extract_strided_slice %66 {offsets = [0, 1], sizes = [1, 126], strides = [1, 1]} : vector<1x128xf32> to vector<1x126xf32>
    %74 = vector.broadcast %72 : vector<16x1xf32> to vector<16x126xf32>
    %75 = vector.broadcast %73 : vector<1x126xf32> to vector<16x126xf32>
    %76 = arith.mulf %74, %75 : vector<16x126xf32>
    %77 = arith.addf %71, %76 : vector<16x126xf32>
    %78 = vector.extract_strided_slice %0 {offsets = [0, 2], sizes = [16, 1], strides = [1, 1]} : vector<16x3xf32> to vector<16x1xf32>
    %79 = vector.extract_strided_slice %66 {offsets = [0, 2], sizes = [1, 126], strides = [1, 1]} : vector<1x128xf32> to vector<1x126xf32>
    %80 = vector.broadcast %78 : vector<16x1xf32> to vector<16x126xf32>
    %81 = vector.broadcast %79 : vector<1x126xf32> to vector<16x126xf32>
    %82 = arith.mulf %80, %81 : vector<16x126xf32>
    %83 = arith.addf %77, %82 : vector<16x126xf32>
    %84 = vector.broadcast %1 : vector<16x1xf32> to vector<16x126xf32>
    %85 = arith.addf %83, %84 : vector<16x126xf32>
    %cst_39 = arith.constant 0.000000e+00 : f32
    %86 = vector.broadcast %cst_39 : f32 to vector<16x126xf32>
    %87 = arith.maximumf %85, %86 : vector<16x126xf32>
    %88 = vector.extract_strided_slice %87 {offsets = [0, 0], sizes = [16, 124], strides = [1, 1]} : vector<16x126xf32> to vector<16x124xf32>
    %89 = vector.extract_strided_slice %87 {offsets = [0, 1], sizes = [16, 124], strides = [1, 1]} : vector<16x126xf32> to vector<16x124xf32>
    %90 = vector.extract_strided_slice %87 {offsets = [0, 2], sizes = [16, 124], strides = [1, 1]} : vector<16x126xf32> to vector<16x124xf32>
    %91 = tpu.concatenate %88, %89, %90 in 0 : vector<16x124xf32>, vector<16x124xf32>, vector<16x124xf32> -> vector<48x124xf32>
    %cst_40 = arith.constant dense<0.000000e+00> : vector<16x124xf32>
    %92 = tpu.matmul %2, %91, %cst_40 {dimension_numbers = #tpu.dot_dimension_numbers<[1], [0], [0], [1], [0, 0, 1, 1], [], []>} : vector<16x48xf32>, vector<48x124xf32>, vector<16x124xf32> -> vector<16x124xf32>
    %93 = vector.broadcast %3 : vector<16x1xf32> to vector<16x124xf32>
    %94 = arith.addf %92, %93 : vector<16x124xf32>
    %cst_41 = arith.constant 0.000000e+00 : f32
    %95 = vector.broadcast %cst_41 : f32 to vector<16x124xf32>
    %96 = arith.maximumf %94, %95 : vector<16x124xf32>
    %cst_42 = arith.constant dense<0.000000e+00> : vector<16x62xf32>
    %97 = tpu.matmul %96, %6, %cst_42 {dimension_numbers = #tpu.dot_dimension_numbers<[1], [0], [0], [1], [0, 0, 1, 1], [], []>} : vector<16x124xf32>, vector<124x62xf32>, vector<16x62xf32> -> vector<16x62xf32>
    %cst_43 = arith.constant dense<0.000000e+00> : vector<16x62xf32>
    %98 = tpu.matmul %96, %7, %cst_43 {dimension_numbers = #tpu.dot_dimension_numbers<[1], [0], [0], [1], [0, 0, 1, 1], [], []>} : vector<16x124xf32>, vector<124x62xf32>, vector<16x62xf32> -> vector<16x62xf32>
    %99 = arith.maximumf %97, %98 : vector<16x62xf32>
    %100 = vector.extract_strided_slice %99 {offsets = [0, 0], sizes = [16, 60], strides = [1, 1]} : vector<16x62xf32> to vector<16x60xf32>
    %101 = vector.extract_strided_slice %99 {offsets = [0, 1], sizes = [16, 60], strides = [1, 1]} : vector<16x62xf32> to vector<16x60xf32>
    %102 = vector.extract_strided_slice %99 {offsets = [0, 2], sizes = [16, 60], strides = [1, 1]} : vector<16x62xf32> to vector<16x60xf32>
    %103 = tpu.concatenate %100, %101, %102 in 0 : vector<16x60xf32>, vector<16x60xf32>, vector<16x60xf32> -> vector<48x60xf32>
    %cst_44 = arith.constant dense<0.000000e+00> : vector<16x60xf32>
    %104 = tpu.matmul %4, %103, %cst_44 {dimension_numbers = #tpu.dot_dimension_numbers<[1], [0], [0], [1], [0, 0, 1, 1], [], []>} : vector<16x48xf32>, vector<48x60xf32>, vector<16x60xf32> -> vector<16x60xf32>
    %105 = vector.broadcast %5 : vector<16x1xf32> to vector<16x60xf32>
    %106 = arith.addf %104, %105 : vector<16x60xf32>
    %cst_45 = arith.constant 0.000000e+00 : f32
    %107 = vector.broadcast %cst_45 : f32 to vector<16x60xf32>
    %108 = arith.maximumf %106, %107 : vector<16x60xf32>
    %cst_46 = arith.constant dense<0.000000e+00> : vector<16x30xf32>
    %109 = tpu.matmul %108, %8, %cst_46 {dimension_numbers = #tpu.dot_dimension_numbers<[1], [0], [0], [1], [0, 0, 1, 1], [], []>} : vector<16x60xf32>, vector<60x30xf32>, vector<16x30xf32> -> vector<16x30xf32>
    %cst_47 = arith.constant dense<0.000000e+00> : vector<16x30xf32>
    %110 = tpu.matmul %108, %9, %cst_47 {dimension_numbers = #tpu.dot_dimension_numbers<[1], [0], [0], [1], [0, 0, 1, 1], [], []>} : vector<16x60xf32>, vector<60x30xf32>, vector<16x30xf32> -> vector<16x30xf32>
    %111 = arith.maximumf %109, %110 : vector<16x30xf32>
    %112 = tpu.concatenate %65, %111 in 0 : vector<16x30xf32>, vector<16x30xf32> -> vector<32x30xf32>
    %cst_48 = arith.constant dense<0.000000e+00> : vector<32x480xf32>
    %113 = tpu.matmul %112, %10, %cst_48 {dimension_numbers = #tpu.dot_dimension_numbers<[1], [0], [0], [1], [0, 0, 1, 1], [], []>} : vector<32x30xf32>, vector<30x480xf32>, vector<32x480xf32> -> vector<32x480xf32>
    %114 = arith.mulf %113, %11 : vector<32x480xf32>
    %c0_49 = arith.constant 0 : index
    %c0_50 = arith.constant 0 : index
    %115 = vector.load %arg15[%c0_49, %c0_50] : memref<2x32xf32, #tpu.memory_space<vmem>>, vector<2x32xf32>
    %cst_51 = arith.constant dense<0.000000e+00> : vector<2x480xf32>
    %116 = tpu.matmul %115, %114, %cst_51 {dimension_numbers = #tpu.dot_dimension_numbers<[1], [0], [0], [1], [0, 0, 1, 1], [], []>} : vector<2x32xf32>, vector<32x480xf32>, vector<2x480xf32> -> vector<2x480xf32>
    %c0_52 = arith.constant 0 : index
    %c0_53 = arith.constant 0 : index
    %117 = vector.load %arg16[%c0_52, %c0_53] : memref<480x64xf32, #tpu.memory_space<vmem>>, vector<480x64xf32>
    %cst_54 = arith.constant dense<0.000000e+00> : vector<2x64xf32>
    %118 = tpu.matmul %116, %117, %cst_54 {dimension_numbers = #tpu.dot_dimension_numbers<[1], [0], [0], [1], [0, 0, 1, 1], [], []>} : vector<2x480xf32>, vector<480x64xf32>, vector<2x64xf32> -> vector<2x64xf32>
    %c0_55 = arith.constant 0 : index
    %c0_56 = arith.constant 0 : index
    %119 = vector.load %arg17[%c0_55, %c0_56] : memref<1x64xf32, #tpu.memory_space<vmem>>, vector<1x64xf32>
    %120 = vector.broadcast %119 : vector<1x64xf32> to vector<2x64xf32>
    %121 = arith.addf %118, %120 : vector<2x64xf32>
    %cst_57 = arith.constant 0.000000e+00 : f32
    %122 = vector.broadcast %cst_57 : f32 to vector<2x64xf32>
    %123 = arith.maximumf %121, %122 : vector<2x64xf32>
    %c0_58 = arith.constant 0 : index
    %c0_59 = arith.constant 0 : index
    %124 = vector.load %arg18[%c0_58, %c0_59] : memref<64x5xf32, #tpu.memory_space<vmem>>, vector<64x5xf32>
    %cst_60 = arith.constant dense<0.000000e+00> : vector<2x5xf32>
    %125 = tpu.matmul %123, %124, %cst_60 {dimension_numbers = #tpu.dot_dimension_numbers<[1], [0], [0], [1], [0, 0, 1, 1], [], []>} : vector<2x64xf32>, vector<64x5xf32>, vector<2x5xf32> -> vector<2x5xf32>
    %c0_61 = arith.constant 0 : index
    %c0_62 = arith.constant 0 : index
    %126 = vector.load %arg19[%c0_61, %c0_62] : memref<1x5xf32, #tpu.memory_space<vmem>>, vector<1x5xf32>
    %127 = vector.broadcast %126 : vector<1x5xf32> to vector<2x5xf32>
    %128 = arith.addf %125, %127 : vector<2x5xf32>
    %c0_63 = arith.constant 0 : index
    %c0_64 = arith.constant 0 : index
    %129 = vector.load %arg20[%c0_63, %c0_64] : memref<2x5xf32, #tpu.memory_space<vmem>>, vector<2x5xf32>
    tpu.vector_store %arg20[%c0_63, %c0_64], %128 {strides = array<i32>} : memref<2x5xf32, #tpu.memory_space<vmem>>, vector<2x5xf32>,
    return
  }
}

</mosaic_0001>

<llo_original>
// kernel: cnn_heart_forward.1
$region0: #{cnn_heart_forward.1}
  #allocation0 [shape = 'u32[]', space=smem, size = 0x4, offset = 0x4, fixed_abs, tag = 'smem constant byte address 0x4 - core index']
  #allocation1 [shape = 'u32[72,128]{1,0:T(1,128)}', space=vmem, size = 0x9000, scoped, tag = 'internal scratch']
  %s0 = inlined_call_operand.vmem [shape: f32[2,16], index: 0, kind: input, shape index: {}]
  %s1 = inlined_call_operand.vmem [shape: f32[16,128], index: 1, kind: input, shape index: {}]
  %s2 = inlined_call_operand.vmem [shape: f32[1,128], index: 2, kind: input, shape index: {}]
  %s3 = inlined_call_operand.vmem [shape: f32[16,3], index: 3, kind: input, shape index: {}]
  %s4 = inlined_call_operand.vmem [shape: f32[16,1], index: 4, kind: input, shape index: {}]
  %s5 = inlined_call_operand.vmem [shape: f32[16,48], index: 5, kind: input, shape index: {}]
  %s6 = inlined_call_operand.vmem [shape: f32[16,1], index: 6, kind: input, shape index: {}]
  %s7 = inlined_call_operand.vmem [shape: f32[16,48], index: 7, kind: input, shape index: {}]
  %s8 = inlined_call_operand.vmem [shape: f32[16,1], index: 8, kind: input, shape index: {}]
  %s9 = inlined_call_operand.vmem [shape: f32[124,62], index: 9, kind: input, shape index: {}]
  %s10 = inlined_call_operand.vmem [shape: f32[124,62], index: 10, kind: input, shape index: {}]
  %s11 = inlined_call_operand.vmem [shape: f32[60,30], index: 11, kind: input, shape index: {}]
  %s12 = inlined_call_operand.vmem [shape: f32[60,30], index: 12, kind: input, shape index: {}]
  %s13 = inlined_call_operand.vmem [shape: f32[30,480], index: 13, kind: input, shape index: {}]
  %s14 = inlined_call_operand.vmem [shape: f32[32,480], index: 14, kind: input, shape index: {}]
  %s15 = inlined_call_operand.vmem [shape: f32[2,32], index: 15, kind: input, shape index: {}]
  %s16 = inlined_call_operand.vmem [shape: f32[480,64], index: 16, kind: input, shape index: {}]
  %s17 = inlined_call_operand.vmem [shape: f32[1,64], index: 17, kind: input, shape index: {}]
  %s18 = inlined_call_operand.vmem [shape: f32[64,5], index: 18, kind: input, shape index: {}]
  %s19 = inlined_call_operand.vmem [shape: f32[1,5], index: 19, kind: input, shape index: {}]
  %s20 = inlined_call_operand.hbm [shape: f32[2,5], index: 20, kind: output, shape index: {}]
  %s21 = sld [smem:[#allocation0]]
  $region90: #{cnn_heart_forward.1} parent=0
    _
  %s23 = ssub.s32 1, %s21
  %s24 = scalar_select 0, %s23, %s21
  $region1: #{cnn_heart_forward.1} parent=0
    #allocation2 [shape = 'u8[1024]{0}', space=vmem, size = 0x400, scoped, tag = 'output window, operand 0, single buffered']
    #allocation3 [shape = 's32[1]{0}', space=sflag, size = 0x4, scoped, tag = 'scoped memory for cnn_heart_forward.1']
    %25 = vsyncpa [#allocation3], 0
    // Predicated region
    $region2: #{cnn_heart_forward.1} parent=1 // pred_check
      _
    $region3: #{cnn_heart_forward.1} parent=1 // pred_check_branch
      %27 = sbr.rel (0) target = $region5
    $region4: #{cnn_heart_forward.1} parent=1 // pred_region
      _
    $region5: #{cnn_heart_forward.1} parent=1 // pred_fallthru
      _
    // Predicated region
    $region6: #{cnn_heart_forward.1} parent=1 // pred_check
      _
    $region7: #{cnn_heart_forward.1} parent=1 // pred_check_branch
      %29 = sbr.rel (0) target = $region9
    $region8: #{cnn_heart_forward.1} parent=1 // pred_region
      _
    $region9: #{cnn_heart_forward.1} parent=1 // pred_fallthru
      _
    // Predicated region
    $region10: #{cnn_heart_forward.1} parent=1 // pred_check
      _
    $region11: #{cnn_heart_forward.1} parent=1 // pred_check_branch
      %31 = sbr.rel (0) target = $region13
    $region12: #{cnn_heart_forward.1} parent=1 // pred_region
      _
    $region13: #{cnn_heart_forward.1} parent=1 // pred_fallthru
      _
    // Predicated region
    $region14: #{cnn_heart_forward.1} parent=1 // pred_check
      _
    $region15: #{cnn_heart_forward.1} parent=1 // pred_check_branch
      %33 = sbr.rel (0) target = $region17
    $region16: #{cnn_heart_forward.1} parent=1 // pred_region
      _
    $region17: #{cnn_heart_forward.1} parent=1 // pred_fallthru
      _
    // Predicated region
    $region18: #{cnn_heart_forward.1} parent=1 // pred_check
      _
    $region19: #{cnn_heart_forward.1} parent=1 // pred_check_branch
      %35 = sbr.rel (0) target = $region21
    $region20: #{cnn_heart_forward.1} parent=1 // pred_region
      _
    $region21: #{cnn_heart_forward.1} parent=1 // pred_fallthru
      _
    // Predicated region
    $region22: #{cnn_heart_forward.1} parent=1 // pred_check
      _
    $region23: #{cnn_heart_forward.1} parent=1 // pred_check_branch
      %37 = sbr.rel (0) target = $region25
    $region24: #{cnn_heart_forward.1} parent=1 // pred_region
      _
    $region25: #{cnn_heart_forward.1} parent=1 // pred_fallthru
      _
    // Predicated region
    $region26: #{cnn_heart_forward.1} parent=1 // pred_check
      _
    $region27: #{cnn_heart_forward.1} parent=1 // pred_check_branch
      %39 = sbr.rel (0) target = $region29
    $region28: #{cnn_heart_forward.1} parent=1 // pred_region
      _
    $region29: #{cnn_heart_forward.1} parent=1 // pred_fallthru
      _
    // Predicated region
    $region30: #{cnn_heart_forward.1} parent=1 // pred_check
      _
    $region31: #{cnn_heart_forward.1} parent=1 // pred_check_branch
      %41 = sbr.rel (0) target = $region33
    $region32: #{cnn_heart_forward.1} parent=1 // pred_region
      _
    $region33: #{cnn_heart_forward.1} parent=1 // pred_fallthru
      _
    // Predicated region
    $region34: #{cnn_heart_forward.1} parent=1 // pred_check
      _
    $region35: #{cnn_heart_forward.1} parent=1 // pred_check_branch
      %43 = sbr.rel (0) target = $region37
    $region36: #{cnn_heart_forward.1} parent=1 // pred_region
      _
    $region37: #{cnn_heart_forward.1} parent=1 // pred_fallthru
      _
    // Predicated region
    $region38: #{cnn_heart_forward.1} parent=1 // pred_check
      _
    $region39: #{cnn_heart_forward.1} parent=1 // pred_check_branch
      %45 = sbr.rel (0) target = $region41
    $region40: #{cnn_heart_forward.1} parent=1 // pred_region
      _
    $region41: #{cnn_heart_forward.1} parent=1 // pred_fallthru
      _
    // Predicated region
    $region42: #{cnn_heart_forward.1} parent=1 // pred_check
      _
    $region43: #{cnn_heart_forward.1} parent=1 // pred_check_branch
      %47 = sbr.rel (0) target = $region45
    $region44: #{cnn_heart_forward.1} parent=1 // pred_region
      _
    $region45: #{cnn_heart_forward.1} parent=1 // pred_fallthru
      _
    // Predicated region
    $region46: #{cnn_heart_forward.1} parent=1 // pred_check
      _
    $region47: #{cnn_heart_forward.1} parent=1 // pred_check_branch
      %49 = sbr.rel (0) target = $region49
    $region48: #{cnn_heart_forward.1} parent=1 // pred_region
      _
    $region49: #{cnn_heart_forward.1} parent=1 // pred_fallthru
      _
    // Predicated region
    $region50: #{cnn_heart_forward.1} parent=1 // pred_check
      _
    $region51: #{cnn_heart_forward.1} parent=1 // pred_check_branch
      %51 = sbr.rel (0) target = $region53
    $region52: #{cnn_heart_forward.1} parent=1 // pred_region
      _
    $region53: #{cnn_heart_forward.1} parent=1 // pred_fallthru
      _
    // Predicated region
    $region54: #{cnn_heart_forward.1} parent=1 // pred_check
      _
    $region55: #{cnn_heart_forward.1} parent=1 // pred_check_branch
      %53 = sbr.rel (0) target = $region57
    $region56: #{cnn_heart_forward.1} parent=1 // pred_region
      _
    $region57: #{cnn_heart_forward.1} parent=1 // pred_fallthru
      _
    // Predicated region
    $region58: #{cnn_heart_forward.1} parent=1 // pred_check
      _
    $region59: #{cnn_heart_forward.1} parent=1 // pred_check_branch
      %55 = sbr.rel (0) target = $region61
    $region60: #{cnn_heart_forward.1} parent=1 // pred_region
      _
    $region61: #{cnn_heart_forward.1} parent=1 // pred_fallthru
      _
    // Predicated region
    $region62: #{cnn_heart_forward.1} parent=1 // pred_check
      _
    $region63: #{cnn_heart_forward.1} parent=1 // pred_check_branch
      %57 = sbr.rel (0) target = $region65
    $region64: #{cnn_heart_forward.1} parent=1 // pred_region
      _
    $region65: #{cnn_heart_forward.1} parent=1 // pred_fallthru
      _
    // Predicated region
    $region66: #{cnn_heart_forward.1} parent=1 // pred_check
      _
    $region67: #{cnn_heart_forward.1} parent=1 // pred_check_branch
      %59 = sbr.rel (0) target = $region69
    $region68: #{cnn_heart_forward.1} parent=1 // pred_region
      _
    $region69: #{cnn_heart_forward.1} parent=1 // pred_fallthru
      _
    // Predicated region
    $region70: #{cnn_heart_forward.1} parent=1 // pred_check
      _
    $region71: #{cnn_heart_forward.1} parent=1 // pred_check_branch
      %61 = sbr.rel (0) target = $region73
    $region72: #{cnn_heart_forward.1} parent=1 // pred_region
      _
    $region73: #{cnn_heart_forward.1} parent=1 // pred_fallthru
      _
    // Predicated region
    $region74: #{cnn_heart_forward.1} parent=1 // pred_check
      _
    $region75: #{cnn_heart_forward.1} parent=1 // pred_check_branch
      %63 = sbr.rel (0) target = $region77
    $region76: #{cnn_heart_forward.1} parent=1 // pred_region
      _
    $region77: #{cnn_heart_forward.1} parent=1 // pred_fallthru
      _
    // Predicated region
    $region78: #{cnn_heart_forward.1} parent=1 // pred_check
      _
    $region79: #{cnn_heart_forward.1} parent=1 // pred_check_branch
      %65 = sbr.rel (0) target = $region81
    $region80: #{cnn_heart_forward.1} parent=1 // pred_region
      _
    $region81: #{cnn_heart_forward.1} parent=1 // pred_fallthru
      _
    %v66 = vld [vmem:[%s3] sm:$0xff]
    %v67 = vld [vmem:[%s3 + $0x8] sm:$0xff]
    %v68 = vld [vmem:[%s4] sm:$0xff]
    %v69 = vld [vmem:[%s4 + $0x8] sm:$0xff]
    %v70 = vld [vmem:[%s5] sm:$0xff]
    %v71 = vld [vmem:[%s5 + $0x8] sm:$0xff]
    %v72 = vld [vmem:[%s6] sm:$0xff]
    %v73 = vld [vmem:[%s6 + $0x8] sm:$0xff]
    %v74 = vld [vmem:[%s7] sm:$0xff]
    %v75 = vld [vmem:[%s7 + $0x8] sm:$0xff]
    %v76 = vld [vmem:[%s8] sm:$0xff]
    %v77 = vld [vmem:[%s8 + $0x8] sm:$0xff]
    %v78 = vld [vmem:[%s9] sm:$0xff]
    %v79 = vld [vmem:[%s9 + $0x8] sm:$0xff]
    %v80 = vld [vmem:[%s9 + $0x10] sm:$0xff]
    %v81 = vld [vmem:[%s9 + $0x18] sm:$0xff]
    %v82 = vld [vmem:[%s9 + $0x20] sm:$0xff]
    %v83 = vld [vmem:[%s9 + $0x28] sm:$0xff]
    %v84 = vld [vmem:[%s9 + $0x30] sm:$0xff]
    %v85 = vld [vmem:[%s9 + $0x38] sm:$0xff]
    %v86 = vld [vmem:[%s9 + $0x40] sm:$0xff]
    %v87 = vld [vmem:[%s9 + $0x48] sm:$0xff]
    %v88 = vld [vmem:[%s9 + $0x50] sm:$0xff]
    %v89 = vld [vmem:[%s9 + $0x58] sm:$0xff]
    %v90 = vld [vmem:[%s9 + $0x60] sm:$0xff]
    %v91 = vld [vmem:[%s9 + $0x68] sm:$0xff]
    %v92 = vld [vmem:[%s9 + $0x70] sm:$0xff]
    %v93 = vld [vmem:[%s9 + $0x78] sm:$0xf]
    %v94 = vld [vmem:[%s10] sm:$0xff]
    %v95 = vld [vmem:[%s10 + $0x8] sm:$0xff]
    %v96 = vld [vmem:[%s10 + $0x10] sm:$0xff]
    %v97 = vld [vmem:[%s10 + $0x18] sm:$0xff]
    %v98 = vld [vmem:[%s10 + $0x20] sm:$0xff]
    %v99 = vld [vmem:[%s10 + $0x28] sm:$0xff]
    %v100 = vld [vmem:[%s10 + $0x30] sm:$0xff]
    %v101 = vld [vmem:[%s10 + $0x38] sm:$0xff]
    %v102 = vld [vmem:[%s10 + $0x40] sm:$0xff]
    %v103 = vld [vmem:[%s10 + $0x48] sm:$0xff]
    %v104 = vld [vmem:[%s10 + $0x50] sm:$0xff]
    %v105 = vld [vmem:[%s10 + $0x58] sm:$0xff]
    %v106 = vld [vmem:[%s10 + $0x60] sm:$0xff]
    %v107 = vld [vmem:[%s10 + $0x68] sm:$0xff]
    %v108 = vld [vmem:[%s10 + $0x70] sm:$0xff]
    %v109 = vld [vmem:[%s10 + $0x78] sm:$0xf]
    %v110 = vld [vmem:[%s11] sm:$0xff]
    %v111 = vld [vmem:[%s11 + $0x8] sm:$0xff]
    %v112 = vld [vmem:[%s11 + $0x10] sm:$0xff]
    %v113 = vld [vmem:[%s11 + $0x18] sm:$0xff]
    %v114 = vld [vmem:[%s11 + $0x20] sm:$0xff]
    %v115 = vld [vmem:[%s11 + $0x28] sm:$0xff]
    %v116 = vld [vmem:[%s11 + $0x30] sm:$0xff]
    %v117 = vld [vmem:[%s11 + $0x38] sm:$0xf]
    %v118 = vld [vmem:[%s12] sm:$0xff]
    %v119 = vld [vmem:[%s12 + $0x8] sm:$0xff]
    %v120 = vld [vmem:[%s12 + $0x10] sm:$0xff]
    %v121 = vld [vmem:[%s12 + $0x18] sm:$0xff]
    %v122 = vld [vmem:[%s12 + $0x20] sm:$0xff]
    %v123 = vld [vmem:[%s12 + $0x28] sm:$0xff]
    %v124 = vld [vmem:[%s12 + $0x30] sm:$0xff]
    %v125 = vld [vmem:[%s12 + $0x38] sm:$0xf]
    %v126 = vld [vmem:[%s13] sm:$0xff]
    %v127 = vld [vmem:[%s13 + $0x8] sm:$0xff]
    %v128 = vld [vmem:[%s13 + $0x10] sm:$0xff]
    %v129 = vld [vmem:[%s13 + $0x18] sm:$0xff]
    %v130 = vld [vmem:[%s13 + $0x20] sm:$0xff]
    %v131 = vld [vmem:[%s13 + $0x28] sm:$0xff]
    %v132 = vld [vmem:[%s13 + $0x30] sm:$0xff]
    %v133 = vld [vmem:[%s13 + $0x38] sm:$0xff]
    %v134 = vld [vmem:[%s13 + $0x40] sm:$0xff]
    %v135 = vld [vmem:[%s13 + $0x48] sm:$0xff]
    %v136 = vld [vmem:[%s13 + $0x50] sm:$0xff]
    %v137 = vld [vmem:[%s13 + $0x58] sm:$0xff]
    %v138 = vld [vmem:[%s13 + $0x60] sm:$0x3f]
    %v139 = vld [vmem:[%s13 + $0x68] sm:$0x3f]
    %v140 = vld [vmem:[%s13 + $0x70] sm:$0x3f]
    %v141 = vld [vmem:[%s13 + $0x78] sm:$0x3f]
    %v142 = vld [vmem:[%s14] sm:$0xff]
    %v143 = vld [vmem:[%s14 + $0x8] sm:$0xff]
    %v144 = vld [vmem:[%s14 + $0x10] sm:$0xff]
    %v145 = vld [vmem:[%s14 + $0x18] sm:$0xff]
    %v146 = vld [vmem:[%s14 + $0x20] sm:$0xff]
    %v147 = vld [vmem:[%s14 + $0x28] sm:$0xff]
    %v148 = vld [vmem:[%s14 + $0x30] sm:$0xff]
    %v149 = vld [vmem:[%s14 + $0x38] sm:$0xff]
    %v150 = vld [vmem:[%s14 + $0x40] sm:$0xff]
    %v151 = vld [vmem:[%s14 + $0x48] sm:$0xff]
    %v152 = vld [vmem:[%s14 + $0x50] sm:$0xff]
    %v153 = vld [vmem:[%s14 + $0x58] sm:$0xff]
    %v154 = vld [vmem:[%s14 + $0x60] sm:$0xff]
    %v155 = vld [vmem:[%s14 + $0x68] sm:$0xff]
    %v156 = vld [vmem:[%s14 + $0x70] sm:$0xff]
    %v157 = vld [vmem:[%s14 + $0x78] sm:$0xff]
    %v158 = vld [vmem:[%s0] sm:$0x3]
    %v159 = vld [vmem:[%s1] sm:$0xff]
    %v160 = vld [vmem:[%s1 + $0x8] sm:$0xff]
    %v161 = vld [vmem:[%s2] sm:$0x1]
    %v163 = vperm.slane %v161, 0
    %vm165 = vcmask 130048
    %v167 = vsel %vm165, %v158, 0
    %169 = vmatpush.msra.mxu0 0.0
    %170 = vmatpush.msra.mxu0 0.0
    %171 = vmatpush.msra.mxu0 0.0
    %172 = vmatpush.msra.mxu0 0.0
    %173 = vmatpush.msra.mxu0 0.0
    %174 = vmatpush.msra.mxu0 0.0
    %175 = vmatpush.msra.mxu0 0.0
    %176 = vmatpush.msra.mxu0 0.0
    %177 = vmatpush.msra.mxu0 0.0
    %178 = vmatpush.msra.mxu0 0.0
    %179 = vmatpush.msra.mxu0 0.0
    %180 = vmatpush.msra.mxu0 0.0
    %181 = vmatpush.msra.mxu0 0.0
    %182 = vmatpush.msra.mxu0 0.0
    %183 = vmatpush.msra.mxu0 %v160
    %184 = vmatpush.msra.mxu0 %v159
    %185 = vmatmul.f32.gmra.mxu0 %v167
    %v186 = vpop.f32.mrf.mxu0
    %v187 = vadd.f32 %v163, %v186
    %188 = vdwg.mxu0
    %v189 = vmax.f32 %v187, 0.0
    %191 = vset.pattern.permute.xlu0 0
    %192 = vperm.xlu0 %191, %v66
    %v193 = vpop.permute.xlu0 %192
    %196 = vset.pattern.permute.xlu0 0
    %197 = vperm.xlu0 %196, %v67
    %v198 = vpop.permute.xlu0 %197
    %v200 = vperm.slane %v189, 0
    %v201 = vmul.f32 %v193, %v200
    %v202 = vmul.f32 %v198, %v200
    %203 = vset.pattern.permute.xlu0 1
    %204 = vperm.xlu0 %203, %v66
    %v205 = vpop.permute.xlu0 %204
    %207 = vset.pattern.permute.xlu0 1
    %208 = vperm.xlu0 %207, %v67
    %v209 = vpop.permute.xlu0 %208
    %v211 = vmul.f32 %v205, %v200
    %v212 = vmul.f32 %v209, %v200
    %215 = vrot.lane.b32.xlu0 %v211, 127
    %v216 = vpop.permute.xlu0 %215
    %217 = vrot.lane.b32.xlu0 %v212, 127
    %v218 = vpop.permute.xlu0 %217
    %v221 = vadd.f32 %v201, %v216
    %v222 = vadd.f32 %v202, %v218
    %223 = vset.pattern.permute.xlu0 2
    %224 = vperm.xlu0 %223, %v66
    %v225 = vpop.permute.xlu0 %224
    %227 = vset.pattern.permute.xlu0 2
    %228 = vperm.xlu0 %227, %v67
    %v229 = vpop.permute.xlu0 %228
    %v231 = vmul.f32 %v225, %v200
    %v232 = vmul.f32 %v229, %v200
    %235 = vrot.lane.b32.xlu0 %v231, 126
    %v236 = vpop.permute.xlu0 %235
    %237 = vrot.lane.b32.xlu0 %v232, 126
    %v238 = vpop.permute.xlu0 %237
    %v241 = vadd.f32 %v221, %v236
    %v242 = vadd.f32 %v222, %v238
    %244 = vset.pattern.permute.xlu0 0
    %245 = vperm.xlu0 %244, %v68
    %v246 = vpop.permute.xlu0 %245
    %249 = vset.pattern.permute.xlu0 0
    %250 = vperm.xlu0 %249, %v69
    %v251 = vpop.permute.xlu0 %250
    %v253 = vadd.f32 %v241, %v246
    %v254 = vadd.f32 %v242, %v251
    %v255 = vmax.f32 %v253, 0.0
    %v256 = vmax.f32 %v254, 0.0
    %259 = vrot.lane.b32.xlu0 %v255, 127
    %v260 = vpop.permute.xlu0 %259
    %261 = vrot.lane.b32.xlu0 %v256, 127
    %v262 = vpop.permute.xlu0 %261
    %265 = vrot.lane.b32.xlu0 %v255, 126
    %v266 = vpop.permute.xlu0 %265
    %267 = vrot.lane.b32.xlu0 %v256, 126
    %v268 = vpop.permute.xlu0 %267
    %272 = vset.pattern.permute.xlu0 0
    %273 = vperm.xlu0 %272, %v72
    %v274 = vpop.permute.xlu0 %273
    %277 = vset.pattern.permute.xlu0 0
    %278 = vperm.xlu0 %277, %v73
    %v279 = vpop.permute.xlu0 %278
    %vm281 = vcmask 392192
    %v283 = vsel %vm281, %v70, 0
    %v286 = vsel %vm281, %v71, 0
    %288 = vmatpush.msra.mxu0 0.0
    %289 = vmatpush.msra.mxu0 0.0
    %290 = vmatpush.msra.mxu0 0.0
    %291 = vmatpush.msra.mxu0 0.0
    %292 = vmatpush.msra.mxu0 0.0
    %293 = vmatpush.msra.mxu0 0.0
    %294 = vmatpush.msra.mxu0 0.0
    %295 = vmatpush.msra.mxu0 0.0
    %296 = vmatpush.msra.mxu0 0.0
    %297 = vmatpush.msra.mxu0 0.0
    %298 = vmatpush.msra.mxu0 %v268
    %299 = vmatpush.msra.mxu0 %v266
    %300 = vmatpush.msra.mxu0 %v262
    %301 = vmatpush.msra.mxu0 %v260
    %302 = vmatpush.msra.mxu0 %v256
    %303 = vmatpush.msra.mxu0 %v255
    %304 = vmatmul.f32.gmra.mxu0 %v283
    %v305 = vpop.f32.mrf.mxu0
    %v306 = vadd.f32 %v274, %v305
    %307 = vmatmul.f32.gmra.mxu0 %v286
    %v308 = vpop.f32.mrf.mxu0
    %v309 = vadd.f32 %v279, %v308
    %310 = vdwg.mxu0
    %v311 = vmax.f32 %v306, 0.0
    %v312 = vmax.f32 %v309, 0.0
    %vm313 = vcmask 1014784
    %v315 = vsel %vm313, %v311, 0
    %v318 = vsel %vm313, %v312, 0
    %vm320 = vcmask 1043456
    %v322 = vsel %vm320, %v93, 0
    %324 = vmatpush.msra.mxu0 %v322
    %325 = vmatpush.msra.mxu0 %v92
    %326 = vmatpush.msra.mxu0 %v91
    %327 = vmatpush.msra.mxu0 %v90
    %328 = vmatpush.msra.mxu0 %v89
    %329 = vmatpush.msra.mxu0 %v88
    %330 = vmatpush.msra.mxu0 %v87
    %331 = vmatpush.msra.mxu0 %v86
    %332 = vmatpush.msra.mxu0 %v85
    %333 = vmatpush.msra.mxu0 %v84
    %334 = vmatpush.msra.mxu0 %v83
    %335 = vmatpush.msra.mxu0 %v82
    %336 = vmatpush.msra.mxu0 %v81
    %337 = vmatpush.msra.mxu0 %v80
    %338 = vmatpush.msra.mxu0 %v79
    %339 = vmatpush.msra.mxu0 %v78
    %340 = vmatmul.f32.gmra.mxu0 %v315
    %v341 = vpop.f32.mrf.mxu0
    %v342 = vadd.f32 0.0, %v341
    %343 = vmatmul.f32.gmra.mxu0 %v318
    %v344 = vpop.f32.mrf.mxu0
    %v345 = vadd.f32 0.0, %v344
    %346 = vdwg.mxu0
    %v348 = vsel %vm320, %v109, 0
    %350 = vmatpush.msra.mxu0 %v348
    %351 = vmatpush.msra.mxu0 %v108
    %352 = vmatpush.msra.mxu0 %v107
    %353 = vmatpush.msra.mxu0 %v106
    %354 = vmatpush.msra.mxu0 %v105
    %355 = vmatpush.msra.mxu0 %v104
    %356 = vmatpush.msra.mxu0 %v103
    %357 = vmatpush.msra.mxu0 %v102
    %358 = vmatpush.msra.mxu0 %v101
    %359 = vmatpush.msra.mxu0 %v100
    %360 = vmatpush.msra.mxu0 %v99
    %361 = vmatpush.msra.mxu0 %v98
    %362 = vmatpush.msra.mxu0 %v97
    %363 = vmatpush.msra.mxu0 %v96
    %364 = vmatpush.msra.mxu0 %v95
    %365 = vmatpush.msra.mxu0 %v94
    %366 = vmatmul.f32.gmra.mxu0 %v315
    %v367 = vpop.f32.mrf.mxu0
    %v368 = vadd.f32 0.0, %v367
    %369 = vmatmul.f32.gmra.mxu0 %v318
    %v370 = vpop.f32.mrf.mxu0
    %v371 = vadd.f32 0.0, %v370
    %372 = vdwg.mxu0
    %v373 = vmax.f32 %v342, %v368
    %v374 = vmax.f32 %v345, %v371
    %377 = vrot.lane.b32.xlu0 %v373, 127
    %v378 = vpop.permute.xlu0 %377
    %379 = vrot.lane.b32.xlu0 %v374, 127
    %v380 = vpop.permute.xlu0 %379
    %383 = vrot.lane.b32.xlu0 %v373, 126
    %v384 = vpop.permute.xlu0 %383
    %385 = vrot.lane.b32.xlu0 %v374, 126
    %v386 = vpop.permute.xlu0 %385
    %390 = vset.pattern.permute.xlu0 0
    %391 = vperm.xlu0 %390, %v76
    %v392 = vpop.permute.xlu0 %391
    %395 = vset.pattern.permute.xlu0 0
    %396 = vperm.xlu0 %395, %v77
    %v397 = vpop.permute.xlu0 %396
    %v400 = vsel %vm281, %v74, 0
    %v403 = vsel %vm281, %v75, 0
    %405 = vmatpush.msra.mxu0 0.0
    %406 = vmatpush.msra.mxu0 0.0
    %407 = vmatpush.msra.mxu0 0.0
    %408 = vmatpush.msra.mxu0 0.0
    %409 = vmatpush.msra.mxu0 0.0
    %410 = vmatpush.msra.mxu0 0.0
    %411 = vmatpush.msra.mxu0 0.0
    %412 = vmatpush.msra.mxu0 0.0
    %413 = vmatpush.msra.mxu0 0.0
    %414 = vmatpush.msra.mxu0 0.0
    %415 = vmatpush.msra.mxu0 %v386
    %416 = vmatpush.msra.mxu0 %v384
    %417 = vmatpush.msra.mxu0 %v380
    %418 = vmatpush.msra.mxu0 %v378
    %419 = vmatpush.msra.mxu0 %v374
    %420 = vmatpush.msra.mxu0 %v373
    %421 = vmatmul.f32.gmra.mxu0 %v400
    %v422 = vpop.f32.mrf.mxu0
    %v423 = vadd.f32 %v392, %v422
    %424 = vmatmul.f32.gmra.mxu0 %v403
    %v425 = vpop.f32.mrf.mxu0
    %v426 = vadd.f32 %v397, %v425
    %427 = vdwg.mxu0
    %v428 = vmax.f32 %v423, 0.0
    %v429 = vmax.f32 %v426, 0.0
    %vm430 = vcmask 490496
    %v432 = vsel %vm430, %v428, 0
    %v435 = vsel %vm430, %v429, 0
    %v438 = vsel %vm320, %v117, 0
    %440 = vmatpush.msra.mxu0 0.0
    %441 = vmatpush.msra.mxu0 0.0
    %442 = vmatpush.msra.mxu0 0.0
    %443 = vmatpush.msra.mxu0 0.0
    %444 = vmatpush.msra.mxu0 0.0
    %445 = vmatpush.msra.mxu0 0.0
    %446 = vmatpush.msra.mxu0 0.0
    %447 = vmatpush.msra.mxu0 0.0
    %448 = vmatpush.msra.mxu0 %v438
    %449 = vmatpush.msra.mxu0 %v116
    %450 = vmatpush.msra.mxu0 %v115
    %451 = vmatpush.msra.mxu0 %v114
    %452 = vmatpush.msra.mxu0 %v113
    %453 = vmatpush.msra.mxu0 %v112
    %454 = vmatpush.msra.mxu0 %v111
    %455 = vmatpush.msra.mxu0 %v110
    %456 = vmatmul.f32.gmra.mxu0 %v432
    %v457 = vpop.f32.mrf.mxu0
    %v458 = vadd.f32 0.0, %v457
    %459 = vmatmul.f32.gmra.mxu0 %v435
    %v460 = vpop.f32.mrf.mxu0
    %v461 = vadd.f32 0.0, %v460
    %462 = vdwg.mxu0
    %v464 = vsel %vm320, %v125, 0
    %466 = vmatpush.msra.mxu0 0.0
    %467 = vmatpush.msra.mxu0 0.0
    %468 = vmatpush.msra.mxu0 0.0
    %469 = vmatpush.msra.mxu0 0.0
    %470 = vmatpush.msra.mxu0 0.0
    %471 = vmatpush.msra.mxu0 0.0
    %472 = vmatpush.msra.mxu0 0.0
    %473 = vmatpush.msra.mxu0 0.0
    %474 = vmatpush.msra.mxu0 %v464
    %475 = vmatpush.msra.mxu0 %v124
    %476 = vmatpush.msra.mxu0 %v123
    %477 = vmatpush.msra.mxu0 %v122
    %478 = vmatpush.msra.mxu0 %v121
    %479 = vmatpush.msra.mxu0 %v120
    %480 = vmatpush.msra.mxu0 %v119
    %481 = vmatpush.msra.mxu0 %v118
    %482 = vmatmul.f32.gmra.mxu0 %v432
    %v483 = vpop.f32.mrf.mxu0
    %v484 = vadd.f32 0.0, %v483
    %485 = vmatmul.f32.gmra.mxu0 %v435
    %v486 = vpop.f32.mrf.mxu0
    %v487 = vadd.f32 0.0, %v486
    %488 = vdwg.mxu0
    %v489 = vmax.f32 %v458, %v484
    %v490 = vmax.f32 %v461, %v487
    %v491 = vperm.slane %v189, 1
    %v492 = vmul.f32 %v193, %v491
    %v493 = vmul.f32 %v198, %v491
    %v494 = vmul.f32 %v205, %v491
    %v495 = vmul.f32 %v209, %v491
    %498 = vrot.lane.b32.xlu0 %v494, 127
    %v499 = vpop.permute.xlu0 %498
    %500 = vrot.lane.b32.xlu0 %v495, 127
    %v501 = vpop.permute.xlu0 %500
    %v504 = vadd.f32 %v492, %v499
    %v505 = vadd.f32 %v493, %v501
    %v506 = vmul.f32 %v225, %v491
    %v507 = vmul.f32 %v229, %v491
    %510 = vrot.lane.b32.xlu0 %v506, 126
    %v511 = vpop.permute.xlu0 %510
    %512 = vrot.lane.b32.xlu0 %v507, 126
    %v513 = vpop.permute.xlu0 %512
    %v516 = vadd.f32 %v504, %v511
    %v517 = vadd.f32 %v505, %v513
    %v518 = vadd.f32 %v516, %v246
    %v519 = vadd.f32 %v517, %v251
    %v520 = vmax.f32 %v518, 0.0
    %v521 = vmax.f32 %v519, 0.0
    %524 = vrot.lane.b32.xlu0 %v520, 127
    %v525 = vpop.permute.xlu0 %524
    %526 = vrot.lane.b32.xlu0 %v521, 127
    %v527 = vpop.permute.xlu0 %526
    %530 = vrot.lane.b32.xlu0 %v520, 126
    %v531 = vpop.permute.xlu0 %530
    %532 = vrot.lane.b32.xlu0 %v521, 126
    %v533 = vpop.permute.xlu0 %532
    %536 = vmatpush.msra.mxu0 0.0
    %537 = vmatpush.msra.mxu0 0.0
    %538 = vmatpush.msra.mxu0 0.0
    %539 = vmatpush.msra.mxu0 0.0
    %540 = vmatpush.msra.mxu0 0.0
    %541 = vmatpush.msra.mxu0 0.0
    %542 = vmatpush.msra.mxu0 0.0
    %543 = vmatpush.msra.mxu0 0.0
    %544 = vmatpush.msra.mxu0 0.0
    %545 = vmatpush.msra.mxu0 0.0
    %546 = vmatpush.msra.mxu0 %v533
    %547 = vmatpush.msra.mxu0 %v531
    %548 = vmatpush.msra.mxu0 %v527
    %549 = vmatpush.msra.mxu0 %v525
    %550 = vmatpush.msra.mxu0 %v521
    %551 = vmatpush.msra.mxu0 %v520
    %552 = vmatmul.f32.gmra.mxu0 %v283
    %v553 = vpop.f32.mrf.mxu0
    %v554 = vadd.f32 %v274, %v553
    %555 = vmatmul.f32.gmra.mxu0 %v286
    %v556 = vpop.f32.mrf.mxu0
    %v557 = vadd.f32 %v279, %v556
    %558 = vdwg.mxu0
    %v559 = vmax.f32 %v554, 0.0
    %v560 = vmax.f32 %v557, 0.0
    %v562 = vsel %vm313, %v559, 0
    %v565 = vsel %vm313, %v560, 0
    %567 = vmatpush.msra.mxu0 %v322
    %568 = vmatpush.msra.mxu0 %v92
    %569 = vmatpush.msra.mxu0 %v91
    %570 = vmatpush.msra.mxu0 %v90
    %571 = vmatpush.msra.mxu0 %v89
    %572 = vmatpush.msra.mxu0 %v88
    %573 = vmatpush.msra.mxu0 %v87
    %574 = vmatpush.msra.mxu0 %v86
    %575 = vmatpush.msra.mxu0 %v85
    %576 = vmatpush.msra.mxu0 %v84
    %577 = vmatpush.msra.mxu0 %v83
    %578 = vmatpush.msra.mxu0 %v82
    %579 = vmatpush.msra.mxu0 %v81
    %580 = vmatpush.msra.mxu0 %v80
    %581 = vmatpush.msra.mxu0 %v79
    %582 = vmatpush.msra.mxu0 %v78
    %583 = vmatmul.f32.gmra.mxu0 %v562
    %v584 = vpop.f32.mrf.mxu0
    %v585 = vadd.f32 0.0, %v584
    %586 = vmatmul.f32.gmra.mxu0 %v565
    %v587 = vpop.f32.mrf.mxu0
    %v588 = vadd.f32 0.0, %v587
    %589 = vdwg.mxu0
    %590 = vmatpush.msra.mxu0 %v348
    %591 = vmatpush.msra.mxu0 %v108
    %592 = vmatpush.msra.mxu0 %v107
    %593 = vmatpush.msra.mxu0 %v106
    %594 = vmatpush.msra.mxu0 %v105
    %595 = vmatpush.msra.mxu0 %v104
    %596 = vmatpush.msra.mxu0 %v103
    %597 = vmatpush.msra.mxu0 %v102
    %598 = vmatpush.msra.mxu0 %v101
    %599 = vmatpush.msra.mxu0 %v100
    %600 = vmatpush.msra.mxu0 %v99
    %601 = vmatpush.msra.mxu0 %v98
    %602 = vmatpush.msra.mxu0 %v97
    %603 = vmatpush.msra.mxu0 %v96
    %604 = vmatpush.msra.mxu0 %v95
    %605 = vmatpush.msra.mxu0 %v94
    %606 = vmatmul.f32.gmra.mxu0 %v562
    %v607 = vpop.f32.mrf.mxu0
    %v608 = vadd.f32 0.0, %v607
    %609 = vmatmul.f32.gmra.mxu0 %v565
    %v610 = vpop.f32.mrf.mxu0
    %v611 = vadd.f32 0.0, %v610
    %612 = vdwg.mxu0
    %v613 = vmax.f32 %v585, %v608
    %v614 = vmax.f32 %v588, %v611
    %617 = vrot.lane.b32.xlu0 %v613, 127
    %v618 = vpop.permute.xlu0 %617
    %619 = vrot.lane.b32.xlu0 %v614, 127
    %v620 = vpop.permute.xlu0 %619
    %623 = vrot.lane.b32.xlu0 %v613, 126
    %v624 = vpop.permute.xlu0 %623
    %625 = vrot.lane.b32.xlu0 %v614, 126
    %v626 = vpop.permute.xlu0 %625
    %629 = vmatpush.msra.mxu0 0.0
    %630 = vmatpush.msra.mxu0 0.0
    %631 = vmatpush.msra.mxu0 0.0
    %632 = vmatpush.msra.mxu0 0.0
    %633 = vmatpush.msra.mxu0 0.0
    %634 = vmatpush.msra.mxu0 0.0
    %635 = vmatpush.msra.mxu0 0.0
    %636 = vmatpush.msra.mxu0 0.0
    %637 = vmatpush.msra.mxu0 0.0
    %638 = vmatpush.msra.mxu0 0.0
    %639 = vmatpush.msra.mxu0 %v626
    %640 = vmatpush.msra.mxu0 %v624
    %641 = vmatpush.msra.mxu0 %v620
    %642 = vmatpush.msra.mxu0 %v618
    %643 = vmatpush.msra.mxu0 %v614
    %644 = vmatpush.msra.mxu0 %v613
    %645 = vmatmul.f32.gmra.mxu0 %v400
    %v646 = vpop.f32.mrf.mxu0
    %v647 = vadd.f32 %v392, %v646
    %648 = vmatmul.f32.gmra.mxu0 %v403
    %v649 = vpop.f32.mrf.mxu0
    %v650 = vadd.f32 %v397, %v649
    %651 = vdwg.mxu0
    %v652 = vmax.f32 %v647, 0.0
    %v653 = vmax.f32 %v650, 0.0
    %v655 = vsel %vm430, %v652, 0
    %v658 = vsel %vm430, %v653, 0
    %660 = vmatpush.msra.mxu0 0.0
    %661 = vmatpush.msra.mxu0 0.0
    %662 = vmatpush.msra.mxu0 0.0
    %663 = vmatpush.msra.mxu0 0.0
    %664 = vmatpush.msra.mxu0 0.0
    %665 = vmatpush.msra.mxu0 0.0
    %666 = vmatpush.msra.mxu0 0.0
    %667 = vmatpush.msra.mxu0 0.0
    %668 = vmatpush.msra.mxu0 %v438
    %669 = vmatpush.msra.mxu0 %v116
    %670 = vmatpush.msra.mxu0 %v115
    %671 = vmatpush.msra.mxu0 %v114
    %672 = vmatpush.msra.mxu0 %v113
    %673 = vmatpush.msra.mxu0 %v112
    %674 = vmatpush.msra.mxu0 %v111
    %675 = vmatpush.msra.mxu0 %v110
    %676 = vmatmul.f32.gmra.mxu0 %v655
    %v677 = vpop.f32.mrf.mxu0
    %v678 = vadd.f32 0.0, %v677
    %679 = vmatmul.f32.gmra.mxu0 %v658
    %v680 = vpop.f32.mrf.mxu0
    %v681 = vadd.f32 0.0, %v680
    %682 = vdwg.mxu0
    %683 = vmatpush.msra.mxu0 0.0
    %684 = vmatpush.msra.mxu0 0.0
    %685 = vmatpush.msra.mxu0 0.0
    %686 = vmatpush.msra.mxu0 0.0
    %687 = vmatpush.msra.mxu0 0.0
    %688 = vmatpush.msra.mxu0 0.0
    %689 = vmatpush.msra.mxu0 0.0
    %690 = vmatpush.msra.mxu0 0.0
    %691 = vmatpush.msra.mxu0 %v464
    %692 = vmatpush.msra.mxu0 %v124
    %693 = vmatpush.msra.mxu0 %v123
    %694 = vmatpush.msra.mxu0 %v122
    %695 = vmatpush.msra.mxu0 %v121
    %696 = vmatpush.msra.mxu0 %v120
    %697 = vmatpush.msra.mxu0 %v119
    %698 = vmatpush.msra.mxu0 %v118
    %699 = vmatmul.f32.gmra.mxu0 %v655
    %v700 = vpop.f32.mrf.mxu0
    %v701 = vadd.f32 0.0, %v700
    %702 = vmatmul.f32.gmra.mxu0 %v658
    %v703 = vpop.f32.mrf.mxu0
    %v704 = vadd.f32 0.0, %v703
    %705 = vdwg.mxu0
    %v706 = vmax.f32 %v678, %v701
    %v707 = vmax.f32 %v681, %v704
    %vm708 = vcmask 244736
    %v710 = vsel %vm708, %v489, 0
    %v713 = vsel %vm708, %v490, 0
    %v716 = vsel %vm708, %v706, 0
    %v719 = vsel %vm708, %v707, 0
    %vm721 = vcmask 1045504
    %v723 = vsel %vm721, %v138, 0
    %v726 = vsel %vm721, %v139, 0
    %v729 = vsel %vm721, %v140, 0
    %v732 = vsel %vm721, %v141, 0
    %734 = vmatpush.msra.mxu0 0.0
    %735 = vmatpush.msra.mxu0 0.0
    %736 = vmatpush.msra.mxu0 0.0
    %737 = vmatpush.msra.mxu0 0.0
    %738 = vmatpush.msra.mxu0 0.0
    %739 = vmatpush.msra.mxu0 0.0
    %740 = vmatpush.msra.mxu0 0.0
    %741 = vmatpush.msra.mxu0 0.0
    %742 = vmatpush.msra.mxu0 0.0
    %743 = vmatpush.msra.mxu0 0.0
    %744 = vmatpush.msra.mxu0 0.0
    %745 = vmatpush.msra.mxu0 0.0
    %746 = vmatpush.msra.mxu0 %v723
    %747 = vmatpush.msra.mxu0 %v134
    %748 = vmatpush.msra.mxu0 %v130
    %749 = vmatpush.msra.mxu0 %v126
    %750 = vmatmul.f32.gmra.mxu0 %v710
    %v751 = vpop.f32.mrf.mxu0
    %v752 = vadd.f32 0.0, %v751
    %753 = vmatmul.f32.gmra.mxu0 %v713
    %v754 = vpop.f32.mrf.mxu0
    %v755 = vadd.f32 0.0, %v754
    %756 = vmatmul.f32.gmra.mxu0 %v716
    %v757 = vpop.f32.mrf.mxu0
    %v758 = vadd.f32 0.0, %v757
    %759 = vmatmul.f32.gmra.mxu0 %v719
    %v760 = vpop.f32.mrf.mxu0
    %v761 = vadd.f32 0.0, %v760
    %762 = vdwg.mxu0
    %763 = vmatpush.msra.mxu0 0.0
    %764 = vmatpush.msra.mxu0 0.0
    %765 = vmatpush.msra.mxu0 0.0
    %766 = vmatpush.msra.mxu0 0.0
    %767 = vmatpush.msra.mxu0 0.0
    %768 = vmatpush.msra.mxu0 0.0
    %769 = vmatpush.msra.mxu0 0.0
    %770 = vmatpush.msra.mxu0 0.0
    %771 = vmatpush.msra.mxu0 0.0
    %772 = vmatpush.msra.mxu0 0.0
    %773 = vmatpush.msra.mxu0 0.0
    %774 = vmatpush.msra.mxu0 0.0
    %775 = vmatpush.msra.mxu0 %v726
    %776 = vmatpush.msra.mxu0 %v135
    %777 = vmatpush.msra.mxu0 %v131
    %778 = vmatpush.msra.mxu0 %v127
    %779 = vmatmul.f32.gmra.mxu0 %v710
    %v780 = vpop.f32.mrf.mxu0
    %v781 = vadd.f32 0.0, %v780
    %782 = vmatmul.f32.gmra.mxu0 %v713
    %v783 = vpop.f32.mrf.mxu0
    %v784 = vadd.f32 0.0, %v783
    %785 = vmatmul.f32.gmra.mxu0 %v716
    %v786 = vpop.f32.mrf.mxu0
    %v787 = vadd.f32 0.0, %v786
    %788 = vmatmul.f32.gmra.mxu0 %v719
    %v789 = vpop.f32.mrf.mxu0
    %v790 = vadd.f32 0.0, %v789
    %791 = vdwg.mxu0
    %792 = vmatpush.msra.mxu0 0.0
    %793 = vmatpush.msra.mxu0 0.0
    %794 = vmatpush.msra.mxu0 0.0
    %795 = vmatpush.msra.mxu0 0.0
    %796 = vmatpush.msra.mxu0 0.0
    %797 = vmatpush.msra.mxu0 0.0
    %798 = vmatpush.msra.mxu0 0.0
    %799 = vmatpush.msra.mxu0 0.0
    %800 = vmatpush.msra.mxu0 0.0
    %801 = vmatpush.msra.mxu0 0.0
    %802 = vmatpush.msra.mxu0 0.0
    %803 = vmatpush.msra.mxu0 0.0
    %804 = vmatpush.msra.mxu0 %v729
    %805 = vmatpush.msra.mxu0 %v136
    %806 = vmatpush.msra.mxu0 %v132
    %807 = vmatpush.msra.mxu0 %v128
    %808 = vmatmul.f32.gmra.mxu0 %v710
    %v809 = vpop.f32.mrf.mxu0
    %v810 = vadd.f32 0.0, %v809
    %811 = vmatmul.f32.gmra.mxu0 %v713
    %v812 = vpop.f32.mrf.mxu0
    %v813 = vadd.f32 0.0, %v812
    %814 = vmatmul.f32.gmra.mxu0 %v716
    %v815 = vpop.f32.mrf.mxu0
    %v816 = vadd.f32 0.0, %v815
    %817 = vmatmul.f32.gmra.mxu0 %v719
    %v818 = vpop.f32.mrf.mxu0
    %v819 = vadd.f32 0.0, %v818
    %820 = vdwg.mxu0
    %821 = vmatpush.msra.mxu0 0.0
    %822 = vmatpush.msra.mxu0 0.0
    %823 = vmatpush.msra.mxu0 0.0
    %824 = vmatpush.msra.mxu0 0.0
    %825 = vmatpush.msra.mxu0 0.0
    %826 = vmatpush.msra.mxu0 0.0
    %827 = vmatpush.msra.mxu0 0.0
    %828 = vmatpush.msra.mxu0 0.0
    %829 = vmatpush.msra.mxu0 0.0
    %830 = vmatpush.msra.mxu0 0.0
    %831 = vmatpush.msra.mxu0 0.0
    %832 = vmatpush.msra.mxu0 0.0
    %833 = vmatpush.msra.mxu0 %v732
    %834 = vmatpush.msra.mxu0 %v137
    %835 = vmatpush.msra.mxu0 %v133
    %836 = vmatpush.msra.mxu0 %v129
    %837 = vmatmul.f32.gmra.mxu0 %v710
    %v838 = vpop.f32.mrf.mxu0
    %v839 = vadd.f32 0.0, %v838
    %840 = vmatmul.f32.gmra.mxu0 %v713
    %v841 = vpop.f32.mrf.mxu0
    %v842 = vadd.f32 0.0, %v841
    %843 = vmatmul.f32.gmra.mxu0 %v716
    %v844 = vpop.f32.mrf.mxu0
    %v845 = vadd.f32 0.0, %v844
    %846 = vmatmul.f32.gmra.mxu0 %v719
    %v847 = vpop.f32.mrf.mxu0
    %v848 = vadd.f32 0.0, %v847
    %849 = vdwg.mxu0
    %v850 = vmul.f32 %v752, %v142
    %v851 = vmul.f32 %v781, %v143
    %v852 = vmul.f32 %v810, %v144
    %v853 = vmul.f32 %v839, %v145
    %v854 = vmul.f32 %v755, %v146
    %v855 = vmul.f32 %v784, %v147
    %v856 = vmul.f32 %v813, %v148
    %v857 = vmul.f32 %v842, %v149
    %v858 = vmul.f32 %v758, %v150
    %v859 = vmul.f32 %v787, %v151
    %v860 = vmul.f32 %v816, %v152
    %v861 = vmul.f32 %v845, %v153
    %v862 = vmul.f32 %v761, %v154
    %v863 = vmul.f32 %v790, %v155
    %v864 = vmul.f32 %v819, %v156
    %v865 = vmul.f32 %v848, %v157
    %v866 = vld [vmem:[%s15] sm:$0x3]
    %vm867 = vcmask 261120
    %v869 = vsel %vm867, %v866, 0
    %871 = vmatpush.msra.mxu0 0.0
    %872 = vmatpush.msra.mxu0 0.0
    %873 = vmatpush.msra.mxu0 0.0
    %874 = vmatpush.msra.mxu0 0.0
    %875 = vmatpush.msra.mxu0 0.0
    %876 = vmatpush.msra.mxu0 0.0
    %877 = vmatpush.msra.mxu0 0.0
    %878 = vmatpush.msra.mxu0 0.0
    %879 = vmatpush.msra.mxu0 0.0
    %880 = vmatpush.msra.mxu0 0.0
    %881 = vmatpush.msra.mxu0 0.0
    %882 = vmatpush.msra.mxu0 0.0
    %883 = vmatpush.msra.mxu0 %v862
    %884 = vmatpush.msra.mxu0 %v858
    %885 = vmatpush.msra.mxu0 %v854
    %886 = vmatpush.msra.mxu0 %v850
    %887 = vmatmul.f32.gmra.mxu0 %v869
    %v888 = vpop.f32.mrf.mxu0
    %v889 = vadd.f32 0.0, %v888
    %890 = vdwg.mxu0
    %891 = vmatpush.msra.mxu0 0.0
    %892 = vmatpush.msra.mxu0 0.0
    %893 = vmatpush.msra.mxu0 0.0
    %894 = vmatpush.msra.mxu0 0.0
    %895 = vmatpush.msra.mxu0 0.0
    %896 = vmatpush.msra.mxu0 0.0
    %897 = vmatpush.msra.mxu0 0.0
    %898 = vmatpush.msra.mxu0 0.0
    %899 = vmatpush.msra.mxu0 0.0
    %900 = vmatpush.msra.mxu0 0.0
    %901 = vmatpush.msra.mxu0 0.0
    %902 = vmatpush.msra.mxu0 0.0
    %903 = vmatpush.msra.mxu0 %v863
    %904 = vmatpush.msra.mxu0 %v859
    %905 = vmatpush.msra.mxu0 %v855
    %906 = vmatpush.msra.mxu0 %v851
    %907 = vmatmul.f32.gmra.mxu0 %v869
    %v908 = vpop.f32.mrf.mxu0
    %v909 = vadd.f32 0.0, %v908
    %910 = vdwg.mxu0
    %911 = vmatpush.msra.mxu0 0.0
    %912 = vmatpush.msra.mxu0 0.0
    %913 = vmatpush.msra.mxu0 0.0
    %914 = vmatpush.msra.mxu0 0.0
    %915 = vmatpush.msra.mxu0 0.0
    %916 = vmatpush.msra.mxu0 0.0
    %917 = vmatpush.msra.mxu0 0.0
    %918 = vmatpush.msra.mxu0 0.0
    %919 = vmatpush.msra.mxu0 0.0
    %920 = vmatpush.msra.mxu0 0.0
    %921 = vmatpush.msra.mxu0 0.0
    %922 = vmatpush.msra.mxu0 0.0
    %923 = vmatpush.msra.mxu0 %v864
    %924 = vmatpush.msra.mxu0 %v860
    %925 = vmatpush.msra.mxu0 %v856
    %926 = vmatpush.msra.mxu0 %v852
    %927 = vmatmul.f32.gmra.mxu0 %v869
    %v928 = vpop.f32.mrf.mxu0
    %v929 = vadd.f32 0.0, %v928
    %930 = vdwg.mxu0
    %931 = vmatpush.msra.mxu0 0.0
    %932 = vmatpush.msra.mxu0 0.0
    %933 = vmatpush.msra.mxu0 0.0
    %934 = vmatpush.msra.mxu0 0.0
    %935 = vmatpush.msra.mxu0 0.0
    %936 = vmatpush.msra.mxu0 0.0
    %937 = vmatpush.msra.mxu0 0.0
    %938 = vmatpush.msra.mxu0 0.0
    %939 = vmatpush.msra.mxu0 0.0
    %940 = vmatpush.msra.mxu0 0.0
    %941 = vmatpush.msra.mxu0 0.0
    %942 = vmatpush.msra.mxu0 0.0
    %943 = vmatpush.msra.mxu0 %v865
    %944 = vmatpush.msra.mxu0 %v861
    %945 = vmatpush.msra.mxu0 %v857
    %946 = vmatpush.msra.mxu0 %v853
    %947 = vmatmul.f32.gmra.mxu0 %v869
    %v948 = vpop.f32.mrf.mxu0
    %v949 = vadd.f32 0.0, %v948
    %950 = vdwg.mxu0
    %v951 = vld [vmem:[%s16] sm:$0xff]
    %v952 = vld [vmem:[%s16 + $0x8] sm:$0xff]
    %v953 = vld [vmem:[%s16 + $0x10] sm:$0xff]
    %v954 = vld [vmem:[%s16 + $0x18] sm:$0xff]
    %v955 = vld [vmem:[%s16 + $0x20] sm:$0xff]
    %v956 = vld [vmem:[%s16 + $0x28] sm:$0xff]
    %v957 = vld [vmem:[%s16 + $0x30] sm:$0xff]
    %v958 = vld [vmem:[%s16 + $0x38] sm:$0xff]
    %v959 = vld [vmem:[%s16 + $0x40] sm:$0xff]
    %v960 = vld [vmem:[%s16 + $0x48] sm:$0xff]
    %v961 = vld [vmem:[%s16 + $0x50] sm:$0xff]
    %v962 = vld [vmem:[%s16 + $0x58] sm:$0xff]
    %v963 = vld [vmem:[%s16 + $0x60] sm:$0xff]
    %v964 = vld [vmem:[%s16 + $0x68] sm:$0xff]
    %v965 = vld [vmem:[%s16 + $0x70] sm:$0xff]
    %v966 = vld [vmem:[%s16 + $0x78] sm:$0xff]
    %v967 = vld [vmem:[%s16 + $0x80] sm:$0xff]
    %v968 = vld [vmem:[%s16 + $0x88] sm:$0xff]
    %v969 = vld [vmem:[%s16 + $0x90] sm:$0xff]
    %v970 = vld [vmem:[%s16 + $0x98] sm:$0xff]
    %v971 = vld [vmem:[%s16 + $0xa0] sm:$0xff]
    %v972 = vld [vmem:[%s16 + $0xa8] sm:$0xff]
    %v973 = vld [vmem:[%s16 + $0xb0] sm:$0xff]
    %v974 = vld [vmem:[%s16 + $0xb8] sm:$0xff]
    %v975 = vld [vmem:[%s16 + $0xc0] sm:$0xff]
    %v976 = vld [vmem:[%s16 + $0xc8] sm:$0xff]
    %v977 = vld [vmem:[%s16 + $0xd0] sm:$0xff]
    %v978 = vld [vmem:[%s16 + $0xd8] sm:$0xff]
    %v979 = vld [vmem:[%s16 + $0xe0] sm:$0xff]
    %v980 = vld [vmem:[%s16 + $0xe8] sm:$0xff]
    %v981 = vld [vmem:[%s16 + $0xf0] sm:$0xff]
    %v982 = vld [vmem:[%s16 + $0xf8] sm:$0xff]
    %v983 = vld [vmem:[%s16 + $0x100] sm:$0xff]
    %v984 = vld [vmem:[%s16 + $0x108] sm:$0xff]
    %v985 = vld [vmem:[%s16 + $0x110] sm:$0xff]
    %v986 = vld [vmem:[%s16 + $0x118] sm:$0xff]
    %v987 = vld [vmem:[%s16 + $0x120] sm:$0xff]
    %v988 = vld [vmem:[%s16 + $0x128] sm:$0xff]
    %v989 = vld [vmem:[%s16 + $0x130] sm:$0xff]
    %v990 = vld [vmem:[%s16 + $0x138] sm:$0xff]
    %v991 = vld [vmem:[%s16 + $0x140] sm:$0xff]
    %v992 = vld [vmem:[%s16 + $0x148] sm:$0xff]
    %v993 = vld [vmem:[%s16 + $0x150] sm:$0xff]
    %v994 = vld [vmem:[%s16 + $0x158] sm:$0xff]
    %v995 = vld [vmem:[%s16 + $0x160] sm:$0xff]
    %v996 = vld [vmem:[%s16 + $0x168] sm:$0xff]
    %v997 = vld [vmem:[%s16 + $0x170] sm:$0xff]
    %v998 = vld [vmem:[%s16 + $0x178] sm:$0xff]
    %v999 = vld [vmem:[%s16 + $0x180] sm:$0xff]
    %v1000 = vld [vmem:[%s16 + $0x188] sm:$0xff]
    %v1001 = vld [vmem:[%s16 + $0x190] sm:$0xff]
    %v1002 = vld [vmem:[%s16 + $0x198] sm:$0xff]
    %v1003 = vld [vmem:[%s16 + $0x1a0] sm:$0xff]
    %v1004 = vld [vmem:[%s16 + $0x1a8] sm:$0xff]
    %v1005 = vld [vmem:[%s16 + $0x1b0] sm:$0xff]
    %v1006 = vld [vmem:[%s16 + $0x1b8] sm:$0xff]
    %v1007 = vld [vmem:[%s16 + $0x1c0] sm:$0xff]
    %v1008 = vld [vmem:[%s16 + $0x1c8] sm:$0xff]
    %v1009 = vld [vmem:[%s16 + $0x1d0] sm:$0xff]
    %v1010 = vld [vmem:[%s16 + $0x1d8] sm:$0xff]
    %v1011 = vld [vmem:[%s17] sm:$0x1]
    %v1013 = vperm.slane %v1011, 0
    %vm1015 = vcmask 785408
    %v1017 = vsel %vm1015, %v949, 0
    %1019 = vmatpush.msra.mxu0 %v966
    %1020 = vmatpush.msra.mxu0 %v965
    %1021 = vmatpush.msra.mxu0 %v964
    %1022 = vmatpush.msra.mxu0 %v963
    %1023 = vmatpush.msra.mxu0 %v962
    %1024 = vmatpush.msra.mxu0 %v961
    %1025 = vmatpush.msra.mxu0 %v960
    %1026 = vmatpush.msra.mxu0 %v959
    %1027 = vmatpush.msra.mxu0 %v958
    %1028 = vmatpush.msra.mxu0 %v957
    %1029 = vmatpush.msra.mxu0 %v956
    %1030 = vmatpush.msra.mxu0 %v955
    %1031 = vmatpush.msra.mxu0 %v954
    %1032 = vmatpush.msra.mxu0 %v953
    %1033 = vmatpush.msra.mxu0 %v952
    %1034 = vmatpush.msra.mxu0 %v951
    %1035 = vmatmul.f32.gmra.mxu0 %v889
    %v1036 = vpop.f32.mrf.mxu0
    %v1037 = vadd.f32 %v1013, %v1036
    %1038 = vdwg.mxu0
    %1039 = vmatpush.msra.mxu0 %v982
    %1040 = vmatpush.msra.mxu0 %v981
    %1041 = vmatpush.msra.mxu0 %v980
    %1042 = vmatpush.msra.mxu0 %v979
    %1043 = vmatpush.msra.mxu0 %v978
    %1044 = vmatpush.msra.mxu0 %v977
    %1045 = vmatpush.msra.mxu0 %v976
    %1046 = vmatpush.msra.mxu0 %v975
    %1047 = vmatpush.msra.mxu0 %v974
    %1048 = vmatpush.msra.mxu0 %v973
    %1049 = vmatpush.msra.mxu0 %v972
    %1050 = vmatpush.msra.mxu0 %v971
    %1051 = vmatpush.msra.mxu0 %v970
    %1052 = vmatpush.msra.mxu0 %v969
    %1053 = vmatpush.msra.mxu0 %v968
    %1054 = vmatpush.msra.mxu0 %v967
    %1055 = vmatmul.f32.gmra.mxu0 %v909
    %v1056 = vpop.f32.mrf.mxu0
    %v1057 = vadd.f32 %v1037, %v1056
    %1058 = vdwg.mxu0
    %1059 = vmatpush.msra.mxu0 %v998
    %1060 = vmatpush.msra.mxu0 %v997
    %1061 = vmatpush.msra.mxu0 %v996
    %1062 = vmatpush.msra.mxu0 %v995
    %1063 = vmatpush.msra.mxu0 %v994
    %1064 = vmatpush.msra.mxu0 %v993
    %1065 = vmatpush.msra.mxu0 %v992
    %1066 = vmatpush.msra.mxu0 %v991
    %1067 = vmatpush.msra.mxu0 %v990
    %1068 = vmatpush.msra.mxu0 %v989
    %1069 = vmatpush.msra.mxu0 %v988
    %1070 = vmatpush.msra.mxu0 %v987
    %1071 = vmatpush.msra.mxu0 %v986
    %1072 = vmatpush.msra.mxu0 %v985
    %1073 = vmatpush.msra.mxu0 %v984
    %1074 = vmatpush.msra.mxu0 %v983
    %1075 = vmatmul.f32.gmra.mxu0 %v929
    %v1076 = vpop.f32.mrf.mxu0
    %v1077 = vadd.f32 %v1057, %v1076
    %1078 = vdwg.mxu0
    %1079 = vmatpush.msra.mxu0 0.0
    %1080 = vmatpush.msra.mxu0 0.0
    %1081 = vmatpush.msra.mxu0 0.0
    %1082 = vmatpush.msra.mxu0 0.0
    %1083 = vmatpush.msra.mxu0 %v1010
    %1084 = vmatpush.msra.mxu0 %v1009
    %1085 = vmatpush.msra.mxu0 %v1008
    %1086 = vmatpush.msra.mxu0 %v1007
    %1087 = vmatpush.msra.mxu0 %v1006
    %1088 = vmatpush.msra.mxu0 %v1005
    %1089 = vmatpush.msra.mxu0 %v1004
    %1090 = vmatpush.msra.mxu0 %v1003
    %1091 = vmatpush.msra.mxu0 %v1002
    %1092 = vmatpush.msra.mxu0 %v1001
    %1093 = vmatpush.msra.mxu0 %v1000
    %1094 = vmatpush.msra.mxu0 %v999
    %1095 = vmatmul.f32.gmra.mxu0 %v1017
    %v1096 = vpop.f32.mrf.mxu0
    %v1097 = vadd.f32 %v1077, %v1096
    %1098 = vdwg.mxu0
    %v1099 = vmax.f32 %v1097, 0.0
    %v1100 = vld [vmem:[%s18] sm:$0xff]
    %v1101 = vld [vmem:[%s18 + $0x8] sm:$0xff]
    %v1102 = vld [vmem:[%s18 + $0x10] sm:$0xff]
    %v1103 = vld [vmem:[%s18 + $0x18] sm:$0xff]
    %v1104 = vld [vmem:[%s18 + $0x20] sm:$0xff]
    %v1105 = vld [vmem:[%s18 + $0x28] sm:$0xff]
    %v1106 = vld [vmem:[%s18 + $0x30] sm:$0xff]
    %v1107 = vld [vmem:[%s18 + $0x38] sm:$0xff]
    %v1108 = vld [vmem:[%s19] sm:$0x1]
    %v1110 = vperm.slane %v1108, 0
    %vm1112 = vcmask 523264
    %v1114 = vsel %vm1112, %v1099, 0
    %1116 = vmatpush.msra.mxu0 0.0
    %1117 = vmatpush.msra.mxu0 0.0
    %1118 = vmatpush.msra.mxu0 0.0
    %1119 = vmatpush.msra.mxu0 0.0
    %1120 = vmatpush.msra.mxu0 0.0
    %1121 = vmatpush.msra.mxu0 0.0
    %1122 = vmatpush.msra.mxu0 0.0
    %1123 = vmatpush.msra.mxu0 0.0
    %1124 = vmatpush.msra.mxu0 %v1107
    %1125 = vmatpush.msra.mxu0 %v1106
    %1126 = vmatpush.msra.mxu0 %v1105
    %1127 = vmatpush.msra.mxu0 %v1104
    %1128 = vmatpush.msra.mxu0 %v1103
    %1129 = vmatpush.msra.mxu0 %v1102
    %1130 = vmatpush.msra.mxu0 %v1101
    %1131 = vmatpush.msra.mxu0 %v1100
    %1132 = vmatmul.f32.gmra.mxu0 %v1114
    %v1133 = vpop.f32.mrf.mxu0
    %v1134 = vadd.f32 %v1110, %v1133
    %1135 = vdwg.mxu0
    %vm1136 = vcmask 33792
    %1137 = vst.msk [vmem:[#allocation2] sm:$0x3] %vm1136, %v1134
    // Predicated region
    $region82: #{cnn_heart_forward.1} parent=1 // pred_check
      _
    $region83: #{cnn_heart_forward.1} parent=1 // pred_check_branch
      %1139 = sbr.rel (0) target = $region85
    $region84: #{cnn_heart_forward.1} parent=1 // pred_region
      %1141 = vsyncadd [#allocation3], 0
      %s1143 = sshll.u32 [#allocation2], 4
      %s1144 = int_to_ptr.vmem [resolvable:$true] %s1143
      %s1145 = sshll.u32 %s20, 4
      %s1146 = int_to_ptr.hbm [resolvable:$true] %s1145
      %1148 = dma.vmem_to_hbm [thread:$0]  %s1144, 32, %s1146, [#allocation3]
    $region85: #{cnn_heart_forward.1} parent=1 // pred_fallthru
      _
    // Predicated region
    $region86: #{cnn_heart_forward.1} parent=1 // pred_check
      _
    $region87: #{cnn_heart_forward.1} parent=1 // pred_check_branch
      %1150 = sbr.rel (0) target = $region89
    $region88: #{cnn_heart_forward.1} parent=1 // pred_region
      %1152 = dma.done [#allocation3], 32
    $region89: #{cnn_heart_forward.1} parent=1 // pred_fallthru
      _
    %1153 = vsyncpa [#allocation3], 1

</llo_original>
